<compile_context>
chip_gen: v7x
topology: tpu7x:2x2x1
jax: 0.10.0
libtpu: 0.0.40
codegen_flags: <defaults>
</compile_context>

<pallas_src>
import jax
import jax.numpy as jnp
from jax import lax
from jax.experimental import pallas as pl
from jax.experimental.pallas import tpu as pltpu

# ----------------------- scaled-down config -----------------------
B = 2              # batch
C_IN = 3           # image channels
IMG_HW = 16        # image spatial size
C_MID = 8          # CNN conv channels
FEAT_DIM = 128     # vision_feature_dim   (orig 2048)
CLS_DIM = 5        # vision_classifier_dim
CLS_PAD = 8        # classifier width padded for aligned slicing
PROJ_HID = 64      # projection_hidden_dim (orig 768)
EMB_DIM = 32       # llm_embedding_dim    (orig 576)
E_PAD = 128        # lane-padded width of the whole LLM path
VOCAB = 64         # synthetic vocab (includes <image>)
SEQ = 8            # sequence length
IMAGE_TOKEN_ID = VOCAB - 1
LORA_R = 4
LORA_ALPHA = 8
LORA_SCALE = LORA_ALPHA / LORA_R

KH = KW = 3
H_OUT = IMG_HW - KH + 1
W_OUT = IMG_HW - KW + 1
N_PATCH = H_OUT * W_OUT          # patches per image (196)
ROWS = B * N_PATCH               # conv-as-matmul lane extent (392)
ROWS_PAD = 512                   # padded to a multiple of 128 lanes
K_CONV = KH * KW * C_IN          # 27
K_AUG = K_CONV + 1               # +1 ones-row carrying the conv bias
K_AUG_PAD = 32
BATCH_PAD = 8                    # vision path runs at 8 padded batch rows
BT = B * SEQ                     # 16

# ----------------------- weight-slab layout (bf16, width 128) -----------------------
def _ceil16(n):
    return ((n + 15) // 16) * 16

# rows the kernel actually loads per block
_W_ROWS = {
    "conv": C_MID, "feat_w": C_MID, "feat_b": BATCH_PAD,
    "merge": FEAT_DIM, "b_merge": BATCH_PAD, "w1s": CLS_PAD, "w2": PROJ_HID,
    "b2": BATCH_PAD, "emb": E_PAD, "wq": E_PAD, "wk": E_PAD, "wv": E_PAD,
    "wo": E_PAD, "head": E_PAD,
}
_W_ORDER = ["conv", "feat_w", "feat_b", "merge", "b_merge", "w1s", "w2", "b2",
            "emb", "wq", "wk", "wv", "wo", "head"]
_W_OFF = {}
_off = 0
for _n in _W_ORDER:
    _W_OFF[_n] = _off
    _off += _ceil16(_W_ROWS[_n])
W_SLAB_ROWS = _off                       # 1056

PX_SLAB_ROWS = K_AUG_PAD + BATCH_PAD     # 40
TOK_SLAB_ROWS = 3 * BT                   # 48: one-hot / sel / attention bias
OUT_ROWS = BT + BATCH_PAD                # 24: logits rows + visual-embedding rows


def _gelu(x):
    return 0.5 * x * (1.0 + jnp.tanh(0.7978845608028654 * (x + 0.044715 * x * x * x)))


# ----------------------- single fused kernel -----------------------
# TODO(synk): the pretrained AutoModelForCausalLM + tokenizer + PEFT LoRA stack
# has no local Pallas equivalent; the LLM here is one LoRA-merged causal
# self-attention block + LM head (LoRA dropout is identity in the forward).
def _fused_kernel(w_ref, px_ref, tok_ref, out_ref):
    f32 = jnp.float32
    bf16 = jnp.bfloat16

    def wblk(name):
        off = _W_OFF[name]
        return w_ref[off:off + _W_ROWS[name], :]

    # ---- frozen vision tower: 3x3 conv as matmul (bias folded via ones-row) ----
    convT = jnp.maximum(
        jnp.dot(wblk("conv")[:, 0:K_AUG_PAD], px_ref[0:K_AUG_PAD, :],
                preferred_element_type=f32), 0.0)                      # (8, 512)
    # global average pool: 0/1 indicator (exact in bf16) contracted over lanes
    pooled = lax.dot_general(
        px_ref[K_AUG_PAD:K_AUG_PAD + BATCH_PAD, :], convT.astype(bf16),
        (((1,), (1,)), ((), ())), preferred_element_type=f32) * (1.0 / N_PATCH)
    feat = jnp.maximum(
        jnp.dot(pooled.astype(bf16), wblk("feat_w"), preferred_element_type=f32)
        + wblk("feat_b").astype(f32), 0.0)                             # (8, 128)

    # ---- classifier logits + projection 1st layer: one shared-LHS merged dot ----
    merged = (jnp.dot(feat.astype(bf16), wblk("merge"), preferred_element_type=f32)
              + wblk("b_merge").astype(f32))                           # (8, 128)
    h_part = merged[:, 0:PROJ_HID]                                     # feat@w1f + b1
    cls_logits = merged[:, PROJ_HID:PROJ_HID + CLS_PAD]                # (8, 8); pad cols killed by zero w1s rows
    sig = 0.5 * (1.0 + jnp.tanh(0.5 * cls_logits))                     # stable sigmoid (EUP)
    h = _gelu(h_part + jnp.dot(sig.astype(bf16), wblk("w1s")[:, 0:PROJ_HID],
                               preferred_element_type=f32))            # (8, 64)
    vis = (jnp.dot(h.astype(bf16), wblk("w2"), preferred_element_type=f32)
           + wblk("b2").astype(f32))                                   # (8, 128), cols >= EMB_DIM are 0

    # ---- embedding lookup (one-hot matmul) + first-<image> replacement ----
    x = jnp.dot(tok_ref[0:BT, :].astype(bf16), wblk("emb"),
                preferred_element_type=f32)                            # (16, 128)
    sel = tok_ref[BT:2 * BT, 0:BATCH_PAD]                              # (16, 8): 1.0 at first <image>
    keep = 1.0 - jnp.sum(sel, axis=-1, keepdims=True)                  # 0 on replaced rows
    x = x * keep + jnp.dot(sel, vis, preferred_element_type=f32)

    # ---- LoRA-merged causal self-attention block (128-lane padded) ----
    xb = x.astype(bf16)
    q = jnp.dot(xb, wblk("wq"), preferred_element_type=f32)
    k = jnp.dot(xb, wblk("wk"), preferred_element_type=f32)
    v = jnp.dot(xb, wblk("wv"), preferred_element_type=f32)
    s = lax.dot_general(q, k, (((1,), (1,)), ((), ())),
                        preferred_element_type=f32) * (EMB_DIM ** -0.5)
    s = s + tok_ref[2 * BT:3 * BT, 0:BT]                               # 0 valid / -1e30 invalid
    m = jnp.max(s, axis=-1, keepdims=True)
    e = jnp.exp(s - m)
    # NOTE: a query row whose every key is masked degenerates to a uniform row;
    # such (padded) positions produce garbage logits that callers must ignore.
    p = e * pl.reciprocal(jnp.sum(e, axis=-1, keepdims=True), approx=True)
    ctx = jnp.dot(p, v, preferred_element_type=f32)
    o = jnp.dot(ctx.astype(bf16), wblk("wo"), preferred_element_type=f32)
    hidden = x + o                                                     # residual
    logits = jnp.dot(hidden.astype(bf16), wblk("head"), preferred_element_type=f32)

    # single lane-dense output slab: logits rows then visual-embedding rows
    out_ref[0:BT, :] = logits
    out_ref[BT:BT + BATCH_PAD, :] = vis


# ----------------------- wrapper (glue in plain JAX) -----------------------
def _pad2(x, rows, cols):
    return jnp.pad(x, ((0, rows - x.shape[0]), (0, cols - x.shape[1])))


def _pack_w_slab(blocks):
    parts = [_pad2(blocks[name], _ceil16(_W_ROWS[name]), 128) for name in _W_ORDER]
    return jnp.concatenate(parts, axis=0).astype(jnp.bfloat16)


def _vmem_spec():
    return pl.BlockSpec(memory_space=pltpu.MemorySpace.VMEM)


_COST = pl.CostEstimate(
    flops=2 * (C_MID * K_AUG_PAD * ROWS_PAD + BATCH_PAD * ROWS_PAD * C_MID
               + BATCH_PAD * C_MID * FEAT_DIM + BATCH_PAD * FEAT_DIM * 128
               + BATCH_PAD * CLS_PAD * PROJ_HID + BATCH_PAD * PROJ_HID * 128
               + 5 * BT * E_PAD * E_PAD + 2 * BT * E_PAD * BT
               + BT * BATCH_PAD * E_PAD),
    transcendentals=BATCH_PAD * (PROJ_HID + CLS_PAD) + BT * BT + BT,
    bytes_accessed=(W_SLAB_ROWS * 128 * 2 + PX_SLAB_ROWS * ROWS_PAD * 2
                    + TOK_SLAB_ROWS * 128 * 4 + OUT_ROWS * 128 * 4),
)


@jax.jit
def carllava_phase2_forward(params, images, input_ids, attention_mask):
    f32 = jnp.float32

    # ---- im2col of the 3x3 valid conv; big dim (B*patches, padded to 512) on lanes ----
    x_nhwc = jnp.transpose(images, (0, 2, 3, 1))
    cols = []
    for di in range(KH):
        for dj in range(KW):
            cols.append(x_nhwc[:, di:di + H_OUT, dj:dj + W_OUT, :])
    patches = jnp.stack(cols, axis=3).reshape(ROWS, K_CONV)            # (392, 27)
    patchesT = jnp.pad(patches.T, ((0, 0), (0, ROWS_PAD - ROWS)))      # (27, 512)
    lane_valid = (jnp.arange(ROWS_PAD) < ROWS).astype(f32)
    patch_blk = jnp.concatenate([patchesT, lane_valid[None, :]], axis=0)   # (28,512); ones-row = conv bias
    patch_blk = jnp.pad(patch_blk, ((0, K_AUG_PAD - K_AUG), (0, 0)))       # (32, 512)
    col_img = jnp.arange(ROWS_PAD) // N_PATCH
    pool_blk = ((col_img[None, :] == jnp.arange(BATCH_PAD)[:, None])
                & (jnp.arange(ROWS_PAD)[None, :] < ROWS)).astype(f32)      # (8, 512) 0/1 indicator
    px_slab = jnp.concatenate([patch_blk, pool_blk], axis=0).astype(jnp.bfloat16)

    # ---- token-dependent index matrices (built once here, not in-kernel) ----
    ids = input_ids.astype(jnp.int32)
    onehot = jax.nn.one_hot(ids.reshape(BT), VOCAB, dtype=f32)          # (16, 64)
    is_img = ids == IMAGE_TOKEN_ID
    first = jnp.cumsum(is_img.astype(jnp.int32), axis=1)
    replace = jnp.logical_and(is_img, first == 1).astype(f32)           # first <image> per sequence
    sel = (replace[:, :, None] * jnp.eye(B, dtype=f32)[:, None, :]).reshape(BT, B)
    pos = jnp.arange(BT)
    same_seq = (pos[:, None] // SEQ) == (pos[None, :] // SEQ)
    causal = pos[:, None] >= pos[None, :]
    key_ok = attention_mask.astype(f32).reshape(BT)[None, :] > 0.5
    valid = jnp.logical_and(jnp.logical_and(same_seq, causal), key_ok)
    attn_bias = jnp.where(valid, 0.0, -1e30).astype(f32)                # (16, 16)
    tok_slab = jnp.concatenate(
        [_pad2(onehot, BT, 128), _pad2(sel, BT, 128), _pad2(attn_bias, BT, 128)], axis=0)

    # ---- pre-merge LoRA; pack every weight/bias into one bf16 slab ----
    def lora_merged(name):
        return (params[f"w{name}"]
                + LORA_SCALE * (params[f"lora_a_{name}"] @ params[f"lora_b_{name}"]))

    blocks = {
        "conv": jnp.concatenate([params["conv_w"].T, params["conv_b"].T], axis=1),  # (8,28); col 27 = bias
        "feat_w": params["feat_w"],
        "feat_b": jnp.broadcast_to(params["feat_b"], (BATCH_PAD, FEAT_DIM)),
        "merge": jnp.concatenate(
            [params["proj_w1f"], _pad2(params["cls_w"], FEAT_DIM, PROJ_HID)], axis=1),
        "b_merge": jnp.broadcast_to(
            jnp.concatenate([params["proj_b1"], _pad2(params["cls_b"], 1, PROJ_HID)], axis=1),
            (BATCH_PAD, 128)),
        "w1s": params["proj_w1s"],
        "w2": params["proj_w2"],
        "b2": jnp.broadcast_to(params["proj_b2"], (BATCH_PAD, EMB_DIM)),
        "emb": params["emb"],
        "wq": lora_merged("q"), "wk": lora_merged("k"), "wv": lora_merged("v"),
        "wo": lora_merged("o"),
        "head": params["head_w"],
    }
    w_slab = _pack_w_slab(blocks)

    out = pl.pallas_call(
        _fused_kernel,
        out_shape=jax.ShapeDtypeStruct((OUT_ROWS, 128), f32),
        in_specs=[_vmem_spec(), _vmem_spec(), _vmem_spec()],
        out_specs=_vmem_spec(),
        cost_estimate=_COST,
    )(w_slab, px_slab, tok_slab)

    logits = out[:BT, :VOCAB].reshape(B, SEQ, VOCAB)
    vis = out[BT:BT + B, :EMB_DIM]
    return {"logits": logits, "visual_embedding": vis}


# ----------------------- deterministic synthetic parameters -----------------------
def init_params(key):
    def normal(k, shape, scale=0.1):
        return scale * jax.random.normal(k, shape, dtype=jnp.float32)

    keys = iter(jax.random.split(key, 32))
    p = {}
    p["conv_w"] = normal(next(keys), (K_CONV, C_MID))
    p["conv_b"] = jnp.zeros((1, C_MID), jnp.float32)
    p["feat_w"] = normal(next(keys), (C_MID, FEAT_DIM))
    p["feat_b"] = jnp.zeros((1, FEAT_DIM), jnp.float32)
    p["cls_w"] = normal(next(keys), (FEAT_DIM, CLS_DIM))
    p["cls_b"] = jnp.zeros((1, CLS_DIM), jnp.float32)
    p["proj_w1f"] = normal(next(keys), (FEAT_DIM, PROJ_HID))
    p["proj_w1s"] = normal(next(keys), (CLS_DIM, PROJ_HID))
    p["proj_b1"] = jnp.zeros((1, PROJ_HID), jnp.float32)
    p["proj_w2"] = normal(next(keys), (PROJ_HID, EMB_DIM))
    p["proj_b2"] = jnp.zeros((1, EMB_DIM), jnp.float32)
    p["emb"] = normal(next(keys), (VOCAB, EMB_DIM))
    for name in ("q", "k", "v", "o"):
        p[f"w{name}"] = normal(next(keys), (EMB_DIM, EMB_DIM))
        p[f"lora_a_{name}"] = normal(next(keys), (EMB_DIM, LORA_R))
        p[f"lora_b_{name}"] = normal(next(keys), (LORA_R, EMB_DIM), scale=0.02)
    p["head_w"] = normal(next(keys), (EMB_DIM, VOCAB))
    return p


if __name__ == "__main__":
    key = jax.random.PRNGKey(0)
    pkey, ikey = jax.random.split(key)
    params = init_params(pkey)

    images = jax.random.normal(ikey, (B, C_IN, IMG_HW, IMG_HW), dtype=jnp.float32)
    input_ids = jnp.array(
        [[5, IMAGE_TOKEN_ID, 7, 9, 11, 13, 2, 4],
         [3, 8, IMAGE_TOKEN_ID, 6, IMAGE_TOKEN_ID, 2, 1, 0]], dtype=jnp.int32)
    attention_mask = jnp.array(
        [[1, 1, 1, 1, 1, 1, 1, 1],
         [1, 1, 1, 1, 1, 1, 1, 0]], dtype=jnp.float32)

    out = carllava_phase2_forward(params, images, input_ids, attention_mask)
    jax.block_until_ready(out)
    assert out["logits"].shape == (B, SEQ, VOCAB)
    assert out["visual_embedding"].shape == (B, EMB_DIM)
    print("KERNEL_OK")
</pallas_src>

<mosaic_0001>
module attributes {stable_mosaic.version = 11 : i64} {
  func.func @_fused_kernel(%arg0: memref<1056x128xbf16, #tpu.memory_space<vmem>>, %arg1: memref<40x512xbf16, #tpu.memory_space<vmem>>, %arg2: memref<48x128xf32, #tpu.memory_space<vmem>>, %arg3: memref<24x128xf32, #tpu.memory_space<vmem>>) attributes {dimension_semantics = [], scalar_prefetch = 0 : i64, scratch_operands = 0 : i64, tpu.core_type = #tpu.core_type<tc>} {
    %c0 = arith.constant 0 : index
    %c0_0 = arith.constant 0 : index
    %0 = vector.load %arg0[%c0, %c0_0] : memref<1056x128xbf16, #tpu.memory_space<vmem>>, vector<8x128xbf16>
    %1 = vector.extract_strided_slice %0 {offsets = [0, 0], sizes = [8, 32], strides = [1, 1]} : vector<8x128xbf16> to vector<8x32xbf16>
    %c0_1 = arith.constant 0 : index
    %c0_2 = arith.constant 0 : index
    %2 = vector.load %arg1[%c0_1, %c0_2] : memref<40x512xbf16, #tpu.memory_space<vmem>>, vector<32x512xbf16>
    %cst = arith.constant dense<0.000000e+00> : vector<8x512xf32>
    %3 = tpu.matmul %1, %2, %cst {dimension_numbers = #tpu.dot_dimension_numbers<[1], [0], [0], [1], [0, 0, 1, 1], [], []>} : vector<8x32xbf16>, vector<32x512xbf16>, vector<8x512xf32> -> vector<8x512xf32>
    %cst_3 = arith.constant 0.000000e+00 : f32
    %4 = vector.broadcast %cst_3 : f32 to vector<8x512xf32>
    %5 = arith.maximumf %3, %4 : vector<8x512xf32>
    %c32 = arith.constant 32 : index
    %c0_4 = arith.constant 0 : index
    %6 = vector.load %arg1[%c32, %c0_4] : memref<40x512xbf16, #tpu.memory_space<vmem>>, vector<8x512xbf16>
    %7 = arith.truncf %5 : vector<8x512xf32> to vector<8x512xbf16>
    %cst_5 = arith.constant dense<0.000000e+00> : vector<8x8xf32>
    %8 = tpu.matmul %6, %7, %cst_5 {dimension_numbers = #tpu.dot_dimension_numbers<[1], [1], [0], [0], [0, 0, 1, 0], [], []>} : vector<8x512xbf16>, vector<8x512xbf16>, vector<8x8xf32> -> vector<8x8xf32>
    %cst_6 = arith.constant 0.00510204071 : f32
    %9 = vector.broadcast %cst_6 : f32 to vector<8x8xf32>
    %10 = arith.mulf %8, %9 : vector<8x8xf32>
    %11 = arith.truncf %10 : vector<8x8xf32> to vector<8x8xbf16>
    %c16 = arith.constant 16 : index
    %c0_7 = arith.constant 0 : index
    %12 = vector.load %arg0[%c16, %c0_7] : memref<1056x128xbf16, #tpu.memory_space<vmem>>, vector<8x128xbf16>
    %cst_8 = arith.constant dense<0.000000e+00> : vector<8x128xf32>
    %13 = tpu.matmul %11, %12, %cst_8 {dimension_numbers = #tpu.dot_dimension_numbers<[1], [0], [0], [1], [0, 0, 1, 1], [], []>} : vector<8x8xbf16>, vector<8x128xbf16>, vector<8x128xf32> -> vector<8x128xf32>
    %c32_9 = arith.constant 32 : index
    %c0_10 = arith.constant 0 : index
    %14 = vector.load %arg0[%c32_9, %c0_10] : memref<1056x128xbf16, #tpu.memory_space<vmem>>, vector<8x128xbf16>
    %15 = arith.extf %14 : vector<8x128xbf16> to vector<8x128xf32>
    %16 = arith.addf %13, %15 : vector<8x128xf32>
    %cst_11 = arith.constant 0.000000e+00 : f32
    %17 = vector.broadcast %cst_11 : f32 to vector<8x128xf32>
    %18 = arith.maximumf %16, %17 : vector<8x128xf32>
    %19 = arith.truncf %18 : vector<8x128xf32> to vector<8x128xbf16>
    %c48 = arith.constant 48 : index
    %c0_12 = arith.constant 0 : index
    %20 = vector.load %arg0[%c48, %c0_12] : memref<1056x128xbf16, #tpu.memory_space<vmem>>, vector<128x128xbf16>
    %cst_13 = arith.constant dense<0.000000e+00> : vector<8x128xf32>
    %21 = tpu.matmul %19, %20, %cst_13 {dimension_numbers = #tpu.dot_dimension_numbers<[1], [0], [0], [1], [0, 0, 1, 1], [], []>} : vector<8x128xbf16>, vector<128x128xbf16>, vector<8x128xf32> -> vector<8x128xf32>
    %c176 = arith.constant 176 : index
    %c0_14 = arith.constant 0 : index
    %22 = vector.load %arg0[%c176, %c0_14] : memref<1056x128xbf16, #tpu.memory_space<vmem>>, vector<8x128xbf16>
    %23 = arith.extf %22 : vector<8x128xbf16> to vector<8x128xf32>
    %24 = arith.addf %21, %23 : vector<8x128xf32>
    %25 = vector.extract_strided_slice %24 {offsets = [0, 0], sizes = [8, 64], strides = [1, 1]} : vector<8x128xf32> to vector<8x64xf32>
    %26 = vector.extract_strided_slice %24 {offsets = [0, 64], sizes = [8, 8], strides = [1, 1]} : vector<8x128xf32> to vector<8x8xf32>
    %cst_15 = arith.constant 5.000000e-01 : f32
    %27 = vector.broadcast %cst_15 : f32 to vector<8x8xf32>
    %28 = arith.mulf %27, %26 : vector<8x8xf32>
    %29 = math.tanh %28 : vector<8x8xf32>
    %cst_16 = arith.constant 1.000000e+00 : f32
    %30 = vector.broadcast %cst_16 : f32 to vector<8x8xf32>
    %31 = arith.addf %30, %29 : vector<8x8xf32>
    %cst_17 = arith.constant 5.000000e-01 : f32
    %32 = vector.broadcast %cst_17 : f32 to vector<8x8xf32>
    %33 = arith.mulf %32, %31 : vector<8x8xf32>
    %34 = arith.truncf %33 : vector<8x8xf32> to vector<8x8xbf16>
    %c192 = arith.constant 192 : index
    %c0_18 = arith.constant 0 : index
    %35 = vector.load %arg0[%c192, %c0_18] : memref<1056x128xbf16, #tpu.memory_space<vmem>>, vector<8x128xbf16>
    %36 = vector.extract_strided_slice %35 {offsets = [0, 0], sizes = [8, 64], strides = [1, 1]} : vector<8x128xbf16> to vector<8x64xbf16>
    %cst_19 = arith.constant dense<0.000000e+00> : vector<8x64xf32>
    %37 = tpu.matmul %34, %36, %cst_19 {dimension_numbers = #tpu.dot_dimension_numbers<[1], [0], [0], [1], [0, 0, 1, 1], [], []>} : vector<8x8xbf16>, vector<8x64xbf16>, vector<8x64xf32> -> vector<8x64xf32>
    %38 = arith.addf %25, %37 : vector<8x64xf32>
    %cst_20 = arith.constant 5.000000e-01 : f32
    %39 = vector.broadcast %cst_20 : f32 to vector<8x64xf32>
    %40 = arith.mulf %39, %38 : vector<8x64xf32>
    %cst_21 = arith.constant 4.471500e-02 : f32
    %41 = vector.broadcast %cst_21 : f32 to vector<8x64xf32>
    %42 = arith.mulf %41, %38 : vector<8x64xf32>
    %43 = arith.mulf %42, %38 : vector<8x64xf32>
    %44 = arith.mulf %43, %38 : vector<8x64xf32>
    %45 = arith.addf %38, %44 : vector<8x64xf32>
    %cst_22 = arith.constant 0.797884583 : f32
    %46 = vector.broadcast %cst_22 : f32 to vector<8x64xf32>
    %47 = arith.mulf %46, %45 : vector<8x64xf32>
    %48 = math.tanh %47 : vector<8x64xf32>
    %cst_23 = arith.constant 1.000000e+00 : f32
    %49 = vector.broadcast %cst_23 : f32 to vector<8x64xf32>
    %50 = arith.addf %49, %48 : vector<8x64xf32>
    %51 = arith.mulf %40, %50 : vector<8x64xf32>
    %52 = arith.truncf %51 : vector<8x64xf32> to vector<8x64xbf16>
    %c208 = arith.constant 208 : index
    %c0_24 = arith.constant 0 : index
    %53 = vector.load %arg0[%c208, %c0_24] : memref<1056x128xbf16, #tpu.memory_space<vmem>>, vector<64x128xbf16>
    %cst_25 = arith.constant dense<0.000000e+00> : vector<8x128xf32>
    %54 = tpu.matmul %52, %53, %cst_25 {dimension_numbers = #tpu.dot_dimension_numbers<[1], [0], [0], [1], [0, 0, 1, 1], [], []>} : vector<8x64xbf16>, vector<64x128xbf16>, vector<8x128xf32> -> vector<8x128xf32>
    %c272 = arith.constant 272 : index
    %c0_26 = arith.constant 0 : index
    %55 = vector.load %arg0[%c272, %c0_26] : memref<1056x128xbf16, #tpu.memory_space<vmem>>, vector<8x128xbf16>
    %56 = arith.extf %55 : vector<8x128xbf16> to vector<8x128xf32>
    %57 = arith.addf %54, %56 : vector<8x128xf32>
    %c0_27 = arith.constant 0 : index
    %c0_28 = arith.constant 0 : index
    %58 = vector.load %arg2[%c0_27, %c0_28] : memref<48x128xf32, #tpu.memory_space<vmem>>, vector<16x128xf32>
    %59 = arith.truncf %58 : vector<16x128xf32> to vector<16x128xbf16>
    %c288 = arith.constant 288 : index
    %c0_29 = arith.constant 0 : index
    %60 = vector.load %arg0[%c288, %c0_29] : memref<1056x128xbf16, #tpu.memory_space<vmem>>, vector<128x128xbf16>
    %cst_30 = arith.constant dense<0.000000e+00> : vector<16x128xf32>
    %61 = tpu.matmul %59, %60, %cst_30 {dimension_numbers = #tpu.dot_dimension_numbers<[1], [0], [0], [1], [0, 0, 1, 1], [], []>} : vector<16x128xbf16>, vector<128x128xbf16>, vector<16x128xf32> -> vector<16x128xf32>
    %c16_31 = arith.constant 16 : index
    %c0_32 = arith.constant 0 : index
    %62 = vector.load %arg2[%c16_31, %c0_32] : memref<48x128xf32, #tpu.memory_space<vmem>>, vector<16x8xf32>
    %cst_33 = arith.constant dense<0.000000e+00> : vector<16xf32>
    %63 = vector.multi_reduction <add>, %62, %cst_33 [1] : vector<16x8xf32> to vector<16xf32>
    %64 = vector.shape_cast %63 : vector<16xf32> to vector<16x1xf32>
    %cst_34 = arith.constant 1.000000e+00 : f32
    %65 = vector.broadcast %cst_34 : f32 to vector<16x1xf32>
    %66 = arith.subf %65, %64 : vector<16x1xf32>
    %67 = vector.broadcast %66 : vector<16x1xf32> to vector<16x128xf32>
    %68 = arith.mulf %61, %67 : vector<16x128xf32>
    %cst_35 = arith.constant dense<0.000000e+00> : vector<16x128xf32>
    %69 = tpu.matmul %62, %57, %cst_35 {dimension_numbers = #tpu.dot_dimension_numbers<[1], [0], [0], [1], [0, 0, 1, 1], [], []>} : vector<16x8xf32>, vector<8x128xf32>, vector<16x128xf32> -> vector<16x128xf32>
    %70 = arith.addf %68, %69 : vector<16x128xf32>
    %71 = arith.truncf %70 : vector<16x128xf32> to vector<16x128xbf16>
    %c416 = arith.constant 416 : index
    %c0_36 = arith.constant 0 : index
    %72 = vector.load %arg0[%c416, %c0_36] : memref<1056x128xbf16, #tpu.memory_space<vmem>>, vector<128x128xbf16>
    %cst_37 = arith.constant dense<0.000000e+00> : vector<16x128xf32>
    %73 = tpu.matmul %71, %72, %cst_37 {dimension_numbers = #tpu.dot_dimension_numbers<[1], [0], [0], [1], [0, 0, 1, 1], [], []>} : vector<16x128xbf16>, vector<128x128xbf16>, vector<16x128xf32> -> vector<16x128xf32>
    %c544 = arith.constant 544 : index
    %c0_38 = arith.constant 0 : index
    %74 = vector.load %arg0[%c544, %c0_38] : memref<1056x128xbf16, #tpu.memory_space<vmem>>, vector<128x128xbf16>
    %cst_39 = arith.constant dense<0.000000e+00> : vector<16x128xf32>
    %75 = tpu.matmul %71, %74, %cst_39 {dimension_numbers = #tpu.dot_dimension_numbers<[1], [0], [0], [1], [0, 0, 1, 1], [], []>} : vector<16x128xbf16>, vector<128x128xbf16>, vector<16x128xf32> -> vector<16x128xf32>
    %c672 = arith.constant 672 : index
    %c0_40 = arith.constant 0 : index
    %76 = vector.load %arg0[%c672, %c0_40] : memref<1056x128xbf16, #tpu.memory_space<vmem>>, vector<128x128xbf16>
    %cst_41 = arith.constant dense<0.000000e+00> : vector<16x128xf32>
    %77 = tpu.matmul %71, %76, %cst_41 {dimension_numbers = #tpu.dot_dimension_numbers<[1], [0], [0], [1], [0, 0, 1, 1], [], []>} : vector<16x128xbf16>, vector<128x128xbf16>, vector<16x128xf32> -> vector<16x128xf32>
    %cst_42 = arith.constant dense<0.000000e+00> : vector<16x16xf32>
    %78 = tpu.matmul %73, %75, %cst_42 {dimension_numbers = #tpu.dot_dimension_numbers<[1], [1], [0], [0], [0, 0, 1, 0], [], []>} : vector<16x128xf32>, vector<16x128xf32>, vector<16x16xf32> -> vector<16x16xf32>
    %cst_43 = arith.constant 0.176776692 : f32
    %79 = vector.broadcast %cst_43 : f32 to vector<16x16xf32>
    %80 = arith.mulf %78, %79 : vector<16x16xf32>
    %c32_44 = arith.constant 32 : index
    %c0_45 = arith.constant 0 : index
    %81 = vector.load %arg2[%c32_44, %c0_45] : memref<48x128xf32, #tpu.memory_space<vmem>>, vector<16x16xf32>
    %82 = arith.addf %80, %81 : vector<16x16xf32>
    %cst_46 = arith.constant dense<0xFF800000> : vector<16xf32>
    %83 = vector.multi_reduction <maximumf>, %82, %cst_46 [1] : vector<16x16xf32> to vector<16xf32>
    %84 = vector.shape_cast %83 : vector<16xf32> to vector<16x1xf32>
    %85 = vector.broadcast %84 : vector<16x1xf32> to vector<16x16xf32>
    %86 = arith.subf %82, %85 : vector<16x16xf32>
    %87 = math.exp %86 : vector<16x16xf32>
    %cst_47 = arith.constant dense<0.000000e+00> : vector<16xf32>
    %88 = vector.multi_reduction <add>, %87, %cst_47 [1] : vector<16x16xf32> to vector<16xf32>
    %89 = vector.shape_cast %88 : vector<16xf32> to vector<16x1xf32>
    %90 = tpu.reciprocal %89 {approx = true} : vector<16x1xf32> -> vector<16x1xf32>
    %91 = vector.broadcast %90 : vector<16x1xf32> to vector<16x16xf32>
    %92 = arith.mulf %87, %91 : vector<16x16xf32>
    %cst_48 = arith.constant dense<0.000000e+00> : vector<16x128xf32>
    %93 = tpu.matmul %92, %77, %cst_48 {dimension_numbers = #tpu.dot_dimension_numbers<[1], [0], [0], [1], [0, 0, 1, 1], [], []>} : vector<16x16xf32>, vector<16x128xf32>, vector<16x128xf32> -> vector<16x128xf32>
    %94 = arith.truncf %93 : vector<16x128xf32> to vector<16x128xbf16>
    %c800 = arith.constant 800 : index
    %c0_49 = arith.constant 0 : index
    %95 = vector.load %arg0[%c800, %c0_49] : memref<1056x128xbf16, #tpu.memory_space<vmem>>, vector<128x128xbf16>
    %cst_50 = arith.constant dense<0.000000e+00> : vector<16x128xf32>
    %96 = tpu.matmul %94, %95, %cst_50 {dimension_numbers = #tpu.dot_dimension_numbers<[1], [0], [0], [1], [0, 0, 1, 1], [], []>} : vector<16x128xbf16>, vector<128x128xbf16>, vector<16x128xf32> -> vector<16x128xf32>
    %97 = arith.addf %70, %96 : vector<16x128xf32>
    %98 = arith.truncf %97 : vector<16x128xf32> to vector<16x128xbf16>
    %c928 = arith.constant 928 : index
    %c0_51 = arith.constant 0 : index
    %99 = vector.load %arg0[%c928, %c0_51] : memref<1056x128xbf16, #tpu.memory_space<vmem>>, vector<128x128xbf16>
    %cst_52 = arith.constant dense<0.000000e+00> : vector<16x128xf32>
    %100 = tpu.matmul %98, %99, %cst_52 {dimension_numbers = #tpu.dot_dimension_numbers<[1], [0], [0], [1], [0, 0, 1, 1], [], []>} : vector<16x128xbf16>, vector<128x128xbf16>, vector<16x128xf32> -> vector<16x128xf32>
    %c0_53 = arith.constant 0 : index
    %c0_54 = arith.constant 0 : index
    %101 = vector.load %arg3[%c0_53, %c0_54] : memref<24x128xf32, #tpu.memory_space<vmem>>, vector<16x128xf32>
    tpu.vector_store %arg3[%c0_53, %c0_54], %100 {strides = array<i32>} : memref<24x128xf32, #tpu.memory_space<vmem>>, vector<16x128xf32>,
    %c16_55 = arith.constant 16 : index
    %c0_56 = arith.constant 0 : index
    %102 = vector.load %arg3[%c16_55, %c0_56] : memref<24x128xf32, #tpu.memory_space<vmem>>, vector<8x128xf32>
    tpu.vector_store %arg3[%c16_55, %c0_56], %57 {strides = array<i32>} : memref<24x128xf32, #tpu.memory_space<vmem>>, vector<8x128xf32>,
    return
  }
}

</mosaic_0001>

<llo_original>
// kernel: eq.1
$region0: #{eq.1}
  %s0 = inlined_call_operand.vmem [shape: s32[2,8], index: 0, kind: input, shape index: {}]
  %s1 = inlined_call_operand.vmem [shape: s32[16], index: 1, kind: output, shape index: {}]
  $region1: #{eq.1} parent=0
    #allocation0 [shape = 'u8[4096]{0}', space=vmem, size = 0x1000, scoped, tag = 'scoped mem for output reshape']
    #allocation1 [shape = 'u8[4096]{0}', space=vmem, size = 0x1000, scoped, tag = 'scoped mem for input reshape']
    %s3 = sshllo.u32 0, 2
    %v4 = vld [vmem:[%s0] sm:%s3]
    %5 = vst [vmem:[#allocation1] sm:%s3] %v4
    %v6 = vld [vmem:[#allocation1] sm:$0x1]
    %vm7 = vcmask 64512
    %8 = vst.msk [vmem:[#allocation0] sm:$0x1] %vm7, %v6
    %s9 = scalar_lea.vmem [#allocation1], 1
    %v10 = vld [vmem:[%s9] sm:$0x1]
    %11 = vrot.lane.b32.xlu0 %v10, 8
    %v12 = vpop.permute.xlu0 %11
    %vm13 = vcmask 130112
    %14 = vst.msk [vmem:[#allocation0] sm:$0x1] %vm13, %v12
    %s16 = sshllo.u32 0, 1
    %v18 = vld [vmem:[#allocation0] sm:%s16]
    %s19 = sshllo.u32 0, 1
    %20 = vst [vmem:[%s1] sm:%s19] %v18

// kernel: carllava_phase2_forward.1
$region0: #{carllava_phase2_forward.1}
  #allocation0 [shape = 'u32[]', space=smem, size = 0x4, offset = 0x4, fixed_abs, tag = 'smem constant byte address 0x4 - core index']
  #allocation1 [shape = 'u32[144,128]{1,0:T(1,128)}', space=vmem, size = 0x12000, scoped, tag = 'internal scratch']
  %s0 = inlined_call_operand.vmem [shape: bf16[1056,128], index: 0, kind: input, shape index: {}]
  %s1 = inlined_call_operand.vmem [shape: bf16[40,512], index: 1, kind: input, shape index: {}]
  %s2 = inlined_call_operand.vmem [shape: f32[48,128], index: 2, kind: input, shape index: {}]
  %s3 = inlined_call_operand.vmem [shape: f32[24,128], index: 3, kind: output, shape index: {}]
  %s4 = sld [smem:[#allocation0]]
  $region22: #{carllava_phase2_forward.1} parent=0
    _
  %s6 = ssub.s32 1, %s4
  %s7 = scalar_select 0, %s6, %s4
  // Predicated region
  $region2: #{carllava_phase2_forward.1} parent=0 // pred_check
    _
  $region3: #{carllava_phase2_forward.1} parent=0 // pred_check_branch
    %9 = sbr.rel (0) target = $region5
  $region4: #{carllava_phase2_forward.1} parent=0 // pred_region
    _
  $region5: #{carllava_phase2_forward.1} parent=0 // pred_fallthru
    _
  // Predicated region
  $region6: #{carllava_phase2_forward.1} parent=0 // pred_check
    _
  $region7: #{carllava_phase2_forward.1} parent=0 // pred_check_branch
    %11 = sbr.rel (0) target = $region9
  $region8: #{carllava_phase2_forward.1} parent=0 // pred_region
    _
  $region9: #{carllava_phase2_forward.1} parent=0 // pred_fallthru
    _
  // Predicated region
  $region10: #{carllava_phase2_forward.1} parent=0 // pred_check
    _
  $region11: #{carllava_phase2_forward.1} parent=0 // pred_check_branch
    %13 = sbr.rel (0) target = $region13
  $region12: #{carllava_phase2_forward.1} parent=0 // pred_region
    _
  $region13: #{carllava_phase2_forward.1} parent=0 // pred_fallthru
    _
  %v15 = vld [vmem:[%s0] sm:$0xf]
  %v16 = vld [vmem:[%s1] sm:$0xff]
  %v17 = vld [vmem:[%s1 + $0x8] sm:$0xff]
  %v18 = vld [vmem:[%s1 + $0x10] sm:$0xff]
  %v19 = vld [vmem:[%s1 + $0x18] sm:$0xff]
  %v20 = vld [vmem:[%s1 + $0x20] sm:$0xff]
  %v21 = vld [vmem:[%s1 + $0x28] sm:$0xff]
  %v22 = vld [vmem:[%s1 + $0x30] sm:$0xff]
  %v23 = vld [vmem:[%s1 + $0x38] sm:$0xff]
  %v32 = vunpack.c.l.b16 %v16
  %v33 = vunpack.c.h.b16 %v16
  %v34 = vunpack.c.l.b16 %v17
  %v35 = vunpack.c.h.b16 %v17
  %v36 = vunpack.c.l.b16 %v18
  %v37 = vunpack.c.h.b16 %v18
  %v38 = vunpack.c.l.b16 %v19
  %v39 = vunpack.c.h.b16 %v19
  %v40 = vunpack.c.l.b16 %v20
  %v41 = vunpack.c.h.b16 %v20
  %v42 = vunpack.c.l.b16 %v21
  %v43 = vunpack.c.h.b16 %v21
  %v44 = vunpack.c.l.b16 %v22
  %v45 = vunpack.c.h.b16 %v22
  %v46 = vunpack.c.l.b16 %v23
  %v47 = vunpack.c.h.b16 %v23
  %v48 = vpack.c.b16 %v36, %v32
  %v49 = vpack.c.b16 %v37, %v33
  %v50 = vpack.c.b16 %v38, %v34
  %v51 = vpack.c.b16 %v39, %v35
  %v52 = vpack.c.b16 %v44, %v40
  %v53 = vpack.c.b16 %v45, %v41
  %v54 = vpack.c.b16 %v46, %v42
  %v55 = vpack.c.b16 %v47, %v43
  %vm64 = vcmask 261120
  %v66 = vsel %vm64, %v15, 0
  %68 = vmatprep.subr.bf16.mxu0 %v49
  %69 = vmatpush1.bf16.msra.mxu0 %v48
  %70 = vmatprep.subr.bf16.mxu0 %v53
  %71 = vmatpush1.bf16.msra.mxu0 %v52
  %72 = vmatprep.subr.bf16.mxu0 0
  %73 = vmatpush1.bf16.msra.mxu0 0
  %74 = vmatprep.subr.bf16.mxu0 0
  %75 = vmatpush1.bf16.msra.mxu0 0
  %76 = vmatprep.subr.bf16.mxu0 0
  %77 = vmatpush1.bf16.msra.mxu0 0
  %78 = vmatprep.subr.bf16.mxu0 0
  %79 = vmatpush1.bf16.msra.mxu0 0
  %80 = vmatprep.subr.bf16.mxu0 0
  %81 = vmatpush1.bf16.msra.mxu0 0
  %82 = vmatprep.subr.bf16.mxu0 0
  %83 = vmatpush1.bf16.msra.mxu0 0
  %84 = vmatprep.subr.bf16.mxu0 0
  %85 = vmatpush1.bf16.msra.mxu0 0
  %86 = vmatprep.subr.bf16.mxu0 0
  %87 = vmatpush1.bf16.msra.mxu0 0
  %88 = vmatprep.subr.bf16.mxu0 0
  %89 = vmatpush1.bf16.msra.mxu0 0
  %90 = vmatprep.subr.bf16.mxu0 0
  %91 = vmatpush1.bf16.msra.mxu0 0
  %92 = vmatprep.subr.bf16.mxu0 0
  %93 = vmatpush1.bf16.msra.mxu0 0
  %94 = vmatprep.subr.bf16.mxu0 0
  %95 = vmatpush1.bf16.msra.mxu0 0
  %96 = vmatprep.subr.bf16.mxu0 0
  %97 = vmatpush1.bf16.msra.mxu0 0
  %98 = vmatprep.subr.bf16.mxu0 0
  %99 = vmatpush1.bf16.msra.mxu0 0
  %100 = vmatprep.mubr.bf16.mxu0 0
  %101 = vmatmul.mubr.bf16.gmra.mrb[0].mxu0 %v66
  %v102 = vpop.f32.mrb[0].mxu0
  %v103 = vadd.f32 0.0, %v102
  %v104 = vpop.f32.mrb[0].mxu0
  %v105 = vadd.f32 0.0, %v104
  %v106 = vpop.f32.mrb[0].mxu0
  %v107 = vpop.f32.mrb[0].mxu0
  %108 = vdwg.mxu0
  %109 = vmatprep.subr.bf16.mxu0 %v51
  %110 = vmatpush1.bf16.msra.mxu0 %v50
  %111 = vmatprep.subr.bf16.mxu0 %v55
  %112 = vmatpush1.bf16.msra.mxu0 %v54
  %113 = vmatprep.subr.bf16.mxu0 0
  %114 = vmatpush1.bf16.msra.mxu0 0
  %115 = vmatprep.subr.bf16.mxu0 0
  %116 = vmatpush1.bf16.msra.mxu0 0
  %117 = vmatprep.subr.bf16.mxu0 0
  %118 = vmatpush1.bf16.msra.mxu0 0
  %119 = vmatprep.subr.bf16.mxu0 0
  %120 = vmatpush1.bf16.msra.mxu0 0
  %121 = vmatprep.subr.bf16.mxu0 0
  %122 = vmatpush1.bf16.msra.mxu0 0
  %123 = vmatprep.subr.bf16.mxu0 0
  %124 = vmatpush1.bf16.msra.mxu0 0
  %125 = vmatprep.subr.bf16.mxu0 0
  %126 = vmatpush1.bf16.msra.mxu0 0
  %127 = vmatprep.subr.bf16.mxu0 0
  %128 = vmatpush1.bf16.msra.mxu0 0
  %129 = vmatprep.subr.bf16.mxu0 0
  %130 = vmatpush1.bf16.msra.mxu0 0
  %131 = vmatprep.subr.bf16.mxu0 0
  %132 = vmatpush1.bf16.msra.mxu0 0
  %133 = vmatprep.subr.bf16.mxu0 0
  %134 = vmatpush1.bf16.msra.mxu0 0
  %135 = vmatprep.subr.bf16.mxu0 0
  %136 = vmatpush1.bf16.msra.mxu0 0
  %137 = vmatprep.subr.bf16.mxu0 0
  %138 = vmatpush1.bf16.msra.mxu0 0
  %139 = vmatprep.subr.bf16.mxu0 0
  %140 = vmatpush1.bf16.msra.mxu0 0
  %141 = vmatprep.mubr.bf16.mxu0 0
  %142 = vmatmul.mubr.bf16.gmra.mrb[0].mxu0 %v66
  %v143 = vpop.f32.mrb[0].mxu0
  %v144 = vadd.f32 0.0, %v143
  %v145 = vpop.f32.mrb[0].mxu0
  %v146 = vadd.f32 0.0, %v145
  %v147 = vpop.f32.mrb[0].mxu0
  %v148 = vpop.f32.mrb[0].mxu0
  %149 = vdwg.mxu0
  %v150 = vmax.f32 %v103, 0.0
  %v151 = vmax.f32 %v105, 0.0
  %v152 = vmax.f32 %v144, 0.0
  %v153 = vmax.f32 %v146, 0.0
  %v154 = vld [vmem:[%s1 + $0x40] sm:$0xff]
  %v155 = vld [vmem:[%s1 + $0x48] sm:$0xff]
  %v156 = vpack.c.bf16 %v150, %v150
  %v157 = vpack.c.bf16 %v151, %v151
  %v158 = vpack.c.bf16 %v152, %v152
  %v159 = vpack.c.bf16 %v153, %v153
  %v162 = vunpack.c.l.b16 %v154
  %v163 = vunpack.c.h.b16 %v154
  %v164 = vunpack.c.l.b16 %v155
  %v165 = vunpack.c.h.b16 %v155
  %v166 = vpack.c.b16 %v162, %v162
  %v167 = vpack.c.b16 %v163, %v163
  %v168 = vpack.c.b16 %v164, %v164
  %v169 = vpack.c.b16 %v165, %v165
  %174 = vmatprep.subr.bf16.mxu0 %v157
  %175 = vmatpush1.bf16.xpose.msra.mxu0 %v156
  %176 = vmatprep.subr.bf16.mxu0 0
  %177 = vmatpush1.bf16.xpose.msra.mxu0 0
  %178 = vmatprep.subr.bf16.mxu0 0
  %179 = vmatpush1.bf16.xpose.msra.mxu0 0
  %180 = vmatprep.subr.bf16.mxu0 0
  %181 = vmatpush1.bf16.xpose.msra.mxu0 0
  %182 = vmatprep.subr.bf16.mxu0 0
  %183 = vmatpush1.bf16.xpose.msra.mxu0 0
  %184 = vmatprep.subr.bf16.mxu0 0
  %185 = vmatpush1.bf16.xpose.msra.mxu0 0
  %186 = vmatprep.subr.bf16.mxu0 0
  %187 = vmatpush1.bf16.xpose.msra.mxu0 0
  %188 = vmatprep.subr.bf16.mxu0 0
  %189 = vmatpush1.bf16.xpose.msra.mxu0 0
  %190 = vmatprep.subr.bf16.mxu0 0
  %191 = vmatpush1.bf16.xpose.msra.mxu0 0
  %192 = vmatprep.subr.bf16.mxu0 0
  %193 = vmatpush1.bf16.xpose.msra.mxu0 0
  %194 = vmatprep.subr.bf16.mxu0 0
  %195 = vmatpush1.bf16.xpose.msra.mxu0 0
  %196 = vmatprep.subr.bf16.mxu0 0
  %197 = vmatpush1.bf16.xpose.msra.mxu0 0
  %198 = vmatprep.subr.bf16.mxu0 0
  %199 = vmatpush1.bf16.xpose.msra.mxu0 0
  %200 = vmatprep.subr.bf16.mxu0 0
  %201 = vmatpush1.bf16.xpose.msra.mxu0 0
  %202 = vmatprep.subr.bf16.mxu0 0
  %203 = vmatpush1.bf16.xpose.msra.mxu0 0
  %204 = vmatprep.subr.bf16.mxu0 0
  %205 = vmatpush1.bf16.xpose.msra.mxu0 0
  %206 = vmatprep.mubr.bf16.mxu0 %v167
  %207 = vmatmul.mubr.bf16.gmra.mrb[0].mxu0 %v166
  %v208 = vpop.f32.mrb[0].mxu0
  %v209 = vadd.f32 0.0, %v208
  %v210 = vpop.f32.mrb[0].mxu0
  %v211 = vpop.f32.mrb[0].mxu0
  %v212 = vpop.f32.mrb[0].mxu0
  %213 = vdwg.mxu0
  %214 = vmatprep.subr.bf16.mxu0 %v159
  %215 = vmatpush1.bf16.xpose.msra.mxu0 %v158
  %216 = vmatprep.subr.bf16.mxu0 0
  %217 = vmatpush1.bf16.xpose.msra.mxu0 0
  %218 = vmatprep.subr.bf16.mxu0 0
  %219 = vmatpush1.bf16.xpose.msra.mxu0 0
  %220 = vmatprep.subr.bf16.mxu0 0
  %221 = vmatpush1.bf16.xpose.msra.mxu0 0
  %222 = vmatprep.subr.bf16.mxu0 0
  %223 = vmatpush1.bf16.xpose.msra.mxu0 0
  %224 = vmatprep.subr.bf16.mxu0 0
  %225 = vmatpush1.bf16.xpose.msra.mxu0 0
  %226 = vmatprep.subr.bf16.mxu0 0
  %227 = vmatpush1.bf16.xpose.msra.mxu0 0
  %228 = vmatprep.subr.bf16.mxu0 0
  %229 = vmatpush1.bf16.xpose.msra.mxu0 0
  %230 = vmatprep.subr.bf16.mxu0 0
  %231 = vmatpush1.bf16.xpose.msra.mxu0 0
  %232 = vmatprep.subr.bf16.mxu0 0
  %233 = vmatpush1.bf16.xpose.msra.mxu0 0
  %234 = vmatprep.subr.bf16.mxu0 0
  %235 = vmatpush1.bf16.xpose.msra.mxu0 0
  %236 = vmatprep.subr.bf16.mxu0 0
  %237 = vmatpush1.bf16.xpose.msra.mxu0 0
  %238 = vmatprep.subr.bf16.mxu0 0
  %239 = vmatpush1.bf16.xpose.msra.mxu0 0
  %240 = vmatprep.subr.bf16.mxu0 0
  %241 = vmatpush1.bf16.xpose.msra.mxu0 0
  %242 = vmatprep.subr.bf16.mxu0 0
  %243 = vmatpush1.bf16.xpose.msra.mxu0 0
  %244 = vmatprep.subr.bf16.mxu0 0
  %245 = vmatpush1.bf16.xpose.msra.mxu0 0
  %246 = vmatprep.mubr.bf16.mxu0 %v169
  %247 = vmatmul.mubr.bf16.gmra.mrb[0].mxu0 %v168
  %v248 = vpop.f32.mrb[0].mxu0
  %v249 = vadd.f32 %v209, %v248
  %v250 = vpop.f32.mrb[0].mxu0
  %v251 = vpop.f32.mrb[0].mxu0
  %v252 = vpop.f32.mrb[0].mxu0
  %253 = vdwg.mxu0
  %v254 = vmul.f32 %v249, 0.0051020407
  %v255 = vpack.c.bf16 %v254, %v254
  %v256 = vld [vmem:[%s0 + $0x8] sm:$0xf]
  %v257 = vld [vmem:[%s0 + $0x10] sm:$0xf]
  %v258 = vunpack.c.l.bf16 %v257
  %vm259 = vcmask 64512
  %v261 = vsel %vm259, %v255, 0
  %vm263 = vcmask 1043456
  %v265 = vsel %vm263, %v256, 0
  %267 = vmatprep.subr.bf16.mxu0 0
  %268 = vmatpush1.bf16.msra.mxu0 %v265
  %269 = vmatprep.subr.bf16.mxu0 0
  %270 = vmatpush1.bf16.msra.mxu0 0
  %271 = vmatprep.subr.bf16.mxu0 0
  %272 = vmatpush1.bf16.msra.mxu0 0
  %273 = vmatprep.subr.bf16.mxu0 0
  %274 = vmatpush1.bf16.msra.mxu0 0
  %275 = vmatprep.subr.bf16.mxu0 0
  %276 = vmatpush1.bf16.msra.mxu0 0
  %277 = vmatprep.subr.bf16.mxu0 0
  %278 = vmatpush1.bf16.msra.mxu0 0
  %279 = vmatprep.subr.bf16.mxu0 0
  %280 = vmatpush1.bf16.msra.mxu0 0
  %281 = vmatprep.subr.bf16.mxu0 0
  %282 = vmatpush1.bf16.msra.mxu0 0
  %283 = vmatprep.subr.bf16.mxu0 0
  %284 = vmatpush1.bf16.msra.mxu0 0
  %285 = vmatprep.subr.bf16.mxu0 0
  %286 = vmatpush1.bf16.msra.mxu0 0
  %287 = vmatprep.subr.bf16.mxu0 0
  %288 = vmatpush1.bf16.msra.mxu0 0
  %289 = vmatprep.subr.bf16.mxu0 0
  %290 = vmatpush1.bf16.msra.mxu0 0
  %291 = vmatprep.subr.bf16.mxu0 0
  %292 = vmatpush1.bf16.msra.mxu0 0
  %293 = vmatprep.subr.bf16.mxu0 0
  %294 = vmatpush1.bf16.msra.mxu0 0
  %295 = vmatprep.subr.bf16.mxu0 0
  %296 = vmatpush1.bf16.msra.mxu0 0
  %297 = vmatprep.subr.bf16.mxu0 0
  %298 = vmatpush1.bf16.msra.mxu0 0
  %299 = vmatprep.mubr.bf16.mxu0 0
  %300 = vmatmul.mubr.bf16.gmra.mrb[0].mxu0 %v261
  %v301 = vpop.f32.mrb[0].mxu0
  %v302 = vadd.f32 %v258, %v301
  %v303 = vpop.f32.mrb[0].mxu0
  %v304 = vpop.f32.mrb[0].mxu0
  %v305 = vpop.f32.mrb[0].mxu0
  %306 = vdwg.mxu0
  %v307 = vmax.f32 %v302, 0.0
  %v308 = vpack.c.bf16 %v307, %v307
  %v309 = vld [vmem:[%s0 + $0x18] sm:$0xf]
  %v310 = vld [vmem:[%s0 + $0x1c] sm:$0xf]
  %v311 = vld [vmem:[%s0 + $0x20] sm:$0xf]
  %v312 = vld [vmem:[%s0 + $0x24] sm:$0xf]
  %v313 = vld [vmem:[%s0 + $0x28] sm:$0xf]
  %v314 = vld [vmem:[%s0 + $0x2c] sm:$0xf]
  %v315 = vld [vmem:[%s0 + $0x30] sm:$0xf]
  %v316 = vld [vmem:[%s0 + $0x34] sm:$0xf]
  %v317 = vld [vmem:[%s0 + $0x38] sm:$0xf]
  %v318 = vld [vmem:[%s0 + $0x3c] sm:$0xf]
  %v319 = vld [vmem:[%s0 + $0x40] sm:$0xf]
  %v320 = vld [vmem:[%s0 + $0x44] sm:$0xf]
  %v321 = vld [vmem:[%s0 + $0x48] sm:$0xf]
  %v322 = vld [vmem:[%s0 + $0x4c] sm:$0xf]
  %v323 = vld [vmem:[%s0 + $0x50] sm:$0xf]
  %v324 = vld [vmem:[%s0 + $0x54] sm:$0xf]
  %v325 = vld [vmem:[%s0 + $0x58] sm:$0xf]
  %v326 = vunpack.c.l.bf16 %v325
  %v343 = vunpack.c.l.b16 %v309
  %v344 = vunpack.c.l.b16 %v310
  %v345 = vunpack.c.l.b16 %v311
  %v346 = vunpack.c.l.b16 %v312
  %v347 = vunpack.c.l.b16 %v313
  %v348 = vunpack.c.l.b16 %v314
  %v349 = vunpack.c.l.b16 %v315
  %v350 = vunpack.c.l.b16 %v316
  %v351 = vunpack.c.l.b16 %v317
  %v352 = vunpack.c.l.b16 %v318
  %v353 = vunpack.c.l.b16 %v319
  %v354 = vunpack.c.l.b16 %v320
  %v355 = vunpack.c.l.b16 %v321
  %v356 = vunpack.c.l.b16 %v322
  %v357 = vunpack.c.l.b16 %v323
  %v358 = vunpack.c.l.b16 %v324
  %v359 = vpack.c.b16 %v344, %v343
  %v360 = vpack.c.b16 %v346, %v345
  %v361 = vpack.c.b16 %v348, %v347
  %v362 = vpack.c.b16 %v350, %v349
  %v363 = vpack.c.b16 %v352, %v351
  %v364 = vpack.c.b16 %v354, %v353
  %v365 = vpack.c.b16 %v356, %v355
  %v366 = vpack.c.b16 %v358, %v357
  %375 = vmatprep.subr.bf16.mxu0 0
  %376 = vmatpush1.bf16.msra.mxu0 %v359
  %377 = vmatprep.subr.bf16.mxu0 0
  %378 = vmatpush1.bf16.msra.mxu0 %v360
  %379 = vmatprep.subr.bf16.mxu0 0
  %380 = vmatpush1.bf16.msra.mxu0 %v361
  %381 = vmatprep.subr.bf16.mxu0 0
  %382 = vmatpush1.bf16.msra.mxu0 %v362
  %383 = vmatprep.subr.bf16.mxu0 0
  %384 = vmatpush1.bf16.msra.mxu0 %v363
  %385 = vmatprep.subr.bf16.mxu0 0
  %386 = vmatpush1.bf16.msra.mxu0 %v364
  %387 = vmatprep.subr.bf16.mxu0 0
  %388 = vmatpush1.bf16.msra.mxu0 %v365
  %389 = vmatprep.subr.bf16.mxu0 0
  %390 = vmatpush1.bf16.msra.mxu0 %v366
  %391 = vmatprep.subr.bf16.mxu0 0
  %392 = vmatpush1.bf16.msra.mxu0 0
  %393 = vmatprep.subr.bf16.mxu0 0
  %394 = vmatpush1.bf16.msra.mxu0 0
  %395 = vmatprep.subr.bf16.mxu0 0
  %396 = vmatpush1.bf16.msra.mxu0 0
  %397 = vmatprep.subr.bf16.mxu0 0
  %398 = vmatpush1.bf16.msra.mxu0 0
  %399 = vmatprep.subr.bf16.mxu0 0
  %400 = vmatpush1.bf16.msra.mxu0 0
  %401 = vmatprep.subr.bf16.mxu0 0
  %402 = vmatpush1.bf16.msra.mxu0 0
  %403 = vmatprep.subr.bf16.mxu0 0
  %404 = vmatpush1.bf16.msra.mxu0 0
  %405 = vmatprep.subr.bf16.mxu0 0
  %406 = vmatpush1.bf16.msra.mxu0 0
  %407 = vmatprep.mubr.bf16.mxu0 0
  %408 = vmatmul.mubr.bf16.gmra.mrb[0].mxu0 %v308
  %v409 = vpop.f32.mrb[0].mxu0
  %v410 = vadd.f32 %v326, %v409
  %v411 = vpop.f32.mrb[0].mxu0
  %v412 = vpop.f32.mrb[0].mxu0
  %v413 = vpop.f32.mrb[0].mxu0
  %414 = vdwg.mxu0
  %v415 = vmul.f32 %v410, 0.5
  %v416 = vtanh.pop %v415
  %v417 = vadd.f32 %v416, 1.0
  %v418 = vmul.f32 %v417, 0.5
  %v419 = vpack.c.bf16 %v418, %v418
  %v420 = vld [vmem:[%s0 + $0x60] sm:$0xf]
  %422 = vrot.lane.b32.xlu0 %v419, 64
  %v423 = vpop.permute.xlu0 %422
  %v425 = vsel %vm259, %v423, 0
  %v428 = vsel %vm263, %v420, 0
  %430 = vmatprep.subr.bf16.mxu0 0
  %431 = vmatpush1.bf16.msra.mxu0 %v428
  %432 = vmatprep.subr.bf16.mxu0 0
  %433 = vmatpush1.bf16.msra.mxu0 0
  %434 = vmatprep.subr.bf16.mxu0 0
  %435 = vmatpush1.bf16.msra.mxu0 0
  %436 = vmatprep.subr.bf16.mxu0 0
  %437 = vmatpush1.bf16.msra.mxu0 0
  %438 = vmatprep.subr.bf16.mxu0 0
  %439 = vmatpush1.bf16.msra.mxu0 0
  %440 = vmatprep.subr.bf16.mxu0 0
  %441 = vmatpush1.bf16.msra.mxu0 0
  %442 = vmatprep.subr.bf16.mxu0 0
  %443 = vmatpush1.bf16.msra.mxu0 0
  %444 = vmatprep.subr.bf16.mxu0 0
  %445 = vmatpush1.bf16.msra.mxu0 0
  %446 = vmatprep.subr.bf16.mxu0 0
  %447 = vmatpush1.bf16.msra.mxu0 0
  %448 = vmatprep.subr.bf16.mxu0 0
  %449 = vmatpush1.bf16.msra.mxu0 0
  %450 = vmatprep.subr.bf16.mxu0 0
  %451 = vmatpush1.bf16.msra.mxu0 0
  %452 = vmatprep.subr.bf16.mxu0 0
  %453 = vmatpush1.bf16.msra.mxu0 0
  %454 = vmatprep.subr.bf16.mxu0 0
  %455 = vmatpush1.bf16.msra.mxu0 0
  %456 = vmatprep.subr.bf16.mxu0 0
  %457 = vmatpush1.bf16.msra.mxu0 0
  %458 = vmatprep.subr.bf16.mxu0 0
  %459 = vmatpush1.bf16.msra.mxu0 0
  %460 = vmatprep.subr.bf16.mxu0 0
  %461 = vmatpush1.bf16.msra.mxu0 0
  %462 = vmatprep.mubr.bf16.mxu0 0
  %463 = vmatmul.mubr.bf16.gmra.mrb[0].mxu0 %v425
  %v464 = vpop.f32.mrb[0].mxu0
  %v465 = vadd.f32 0.0, %v464
  %v466 = vpop.f32.mrb[0].mxu0
  %v467 = vpop.f32.mrb[0].mxu0
  %v468 = vpop.f32.mrb[0].mxu0
  %469 = vdwg.mxu0
  %v470 = vadd.f32 %v410, %v465
  %v471 = vmul.f32 %v470, 0.5
  %v472 = vmul.f32 %v470, 0.044715
  %v473 = vmul.f32 %v472, %v470
  %v474 = vmul.f32 %v473, %v470
  %v475 = vadd.f32 %v470, %v474
  %v476 = vmul.f32 %v475, 0.7978846
  %v477 = vtanh.pop %v476
  %v478 = vadd.f32 %v477, 1.0
  %v479 = vmul.f32 %v471, %v478
  %v480 = vpack.c.bf16 %v479, %v479
  %v481 = vld [vmem:[%s0 + $0x68] sm:$0xf]
  %v482 = vld [vmem:[%s0 + $0x6c] sm:$0xf]
  %v483 = vld [vmem:[%s0 + $0x70] sm:$0xf]
  %v484 = vld [vmem:[%s0 + $0x74] sm:$0xf]
  %v485 = vld [vmem:[%s0 + $0x78] sm:$0xf]
  %v486 = vld [vmem:[%s0 + $0x7c] sm:$0xf]
  %v487 = vld [vmem:[%s0 + $0x80] sm:$0xf]
  %v488 = vld [vmem:[%s0 + $0x84] sm:$0xf]
  %v489 = vld [vmem:[%s0 + $0x88] sm:$0xf]
  %v490 = vunpack.c.l.bf16 %v489
  %v499 = vunpack.c.l.b16 %v481
  %v500 = vunpack.c.l.b16 %v482
  %v501 = vunpack.c.l.b16 %v483
  %v502 = vunpack.c.l.b16 %v484
  %v503 = vunpack.c.l.b16 %v485
  %v504 = vunpack.c.l.b16 %v486
  %v505 = vunpack.c.l.b16 %v487
  %v506 = vunpack.c.l.b16 %v488
  %v507 = vpack.c.b16 %v500, %v499
  %v508 = vpack.c.b16 %v502, %v501
  %v509 = vpack.c.b16 %v504, %v503
  %v510 = vpack.c.b16 %v506, %v505
  %vm515 = vcmask 523264
  %v517 = vsel %vm515, %v480, 0
  %519 = vmatprep.subr.bf16.mxu0 0
  %520 = vmatpush1.bf16.msra.mxu0 %v507
  %521 = vmatprep.subr.bf16.mxu0 0
  %522 = vmatpush1.bf16.msra.mxu0 %v508
  %523 = vmatprep.subr.bf16.mxu0 0
  %524 = vmatpush1.bf16.msra.mxu0 %v509
  %525 = vmatprep.subr.bf16.mxu0 0
  %526 = vmatpush1.bf16.msra.mxu0 %v510
  %527 = vmatprep.subr.bf16.mxu0 0
  %528 = vmatpush1.bf16.msra.mxu0 0
  %529 = vmatprep.subr.bf16.mxu0 0
  %530 = vmatpush1.bf16.msra.mxu0 0
  %531 = vmatprep.subr.bf16.mxu0 0
  %532 = vmatpush1.bf16.msra.mxu0 0
  %533 = vmatprep.subr.bf16.mxu0 0
  %534 = vmatpush1.bf16.msra.mxu0 0
  %535 = vmatprep.subr.bf16.mxu0 0
  %536 = vmatpush1.bf16.msra.mxu0 0
  %537 = vmatprep.subr.bf16.mxu0 0
  %538 = vmatpush1.bf16.msra.mxu0 0
  %539 = vmatprep.subr.bf16.mxu0 0
  %540 = vmatpush1.bf16.msra.mxu0 0
  %541 = vmatprep.subr.bf16.mxu0 0
  %542 = vmatpush1.bf16.msra.mxu0 0
  %543 = vmatprep.subr.bf16.mxu0 0
  %544 = vmatpush1.bf16.msra.mxu0 0
  %545 = vmatprep.subr.bf16.mxu0 0
  %546 = vmatpush1.bf16.msra.mxu0 0
  %547 = vmatprep.subr.bf16.mxu0 0
  %548 = vmatpush1.bf16.msra.mxu0 0
  %549 = vmatprep.subr.bf16.mxu0 0
  %550 = vmatpush1.bf16.msra.mxu0 0
  %551 = vmatprep.mubr.bf16.mxu0 0
  %552 = vmatmul.mubr.bf16.gmra.mrb[0].mxu0 %v517
  %v553 = vpop.f32.mrb[0].mxu0
  %v554 = vadd.f32 %v490, %v553
  %v555 = vpop.f32.mrb[0].mxu0
  %v556 = vpop.f32.mrb[0].mxu0
  %v557 = vpop.f32.mrb[0].mxu0
  %558 = vdwg.mxu0
  %v559 = vld [vmem:[%s2] sm:$0xff]
  %v560 = vld [vmem:[%s2 + $0x8] sm:$0xff]
  %v561 = vpack.c.bf16 %v560, %v559
  %v562 = vld [vmem:[%s0 + $0x90] sm:$0xf]
  %v563 = vld [vmem:[%s0 + $0x94] sm:$0xf]
  %v564 = vld [vmem:[%s0 + $0x98] sm:$0xf]
  %v565 = vld [vmem:[%s0 + $0x9c] sm:$0xf]
  %v566 = vld [vmem:[%s0 + $0xa0] sm:$0xf]
  %v567 = vld [vmem:[%s0 + $0xa4] sm:$0xf]
  %v568 = vld [vmem:[%s0 + $0xa8] sm:$0xf]
  %v569 = vld [vmem:[%s0 + $0xac] sm:$0xf]
  %v570 = vld [vmem:[%s0 + $0xb0] sm:$0xf]
  %v571 = vld [vmem:[%s0 + $0xb4] sm:$0xf]
  %v572 = vld [vmem:[%s0 + $0xb8] sm:$0xf]
  %v573 = vld [vmem:[%s0 + $0xbc] sm:$0xf]
  %v574 = vld [vmem:[%s0 + $0xc0] sm:$0xf]
  %v575 = vld [vmem:[%s0 + $0xc4] sm:$0xf]
  %v576 = vld [vmem:[%s0 + $0xc8] sm:$0xf]
  %v577 = vld [vmem:[%s0 + $0xcc] sm:$0xf]
  %v594 = vunpack.c.l.b16 %v562
  %v595 = vunpack.c.l.b16 %v563
  %v596 = vunpack.c.l.b16 %v564
  %v597 = vunpack.c.l.b16 %v565
  %v598 = vunpack.c.l.b16 %v566
  %v599 = vunpack.c.l.b16 %v567
  %v600 = vunpack.c.l.b16 %v568
  %v601 = vunpack.c.l.b16 %v569
  %v602 = vunpack.c.l.b16 %v570
  %v603 = vunpack.c.l.b16 %v571
  %v604 = vunpack.c.l.b16 %v572
  %v605 = vunpack.c.l.b16 %v573
  %v606 = vunpack.c.l.b16 %v574
  %v607 = vunpack.c.l.b16 %v575
  %v608 = vunpack.c.l.b16 %v576
  %v609 = vunpack.c.l.b16 %v577
  %v610 = vpack.c.b16 %v595, %v594
  %v611 = vpack.c.b16 %v597, %v596
  %v612 = vpack.c.b16 %v599, %v598
  %v613 = vpack.c.b16 %v601, %v600
  %v614 = vpack.c.b16 %v603, %v602
  %v615 = vpack.c.b16 %v605, %v604
  %v616 = vpack.c.b16 %v607, %v606
  %v617 = vpack.c.b16 %v609, %v608
  %626 = vmatprep.subr.bf16.mxu0 0
  %627 = vmatpush1.bf16.msra.mxu0 %v610
  %628 = vmatprep.subr.bf16.mxu0 0
  %629 = vmatpush1.bf16.msra.mxu0 %v611
  %630 = vmatprep.subr.bf16.mxu0 0
  %631 = vmatpush1.bf16.msra.mxu0 %v612
  %632 = vmatprep.subr.bf16.mxu0 0
  %633 = vmatpush1.bf16.msra.mxu0 %v613
  %634 = vmatprep.subr.bf16.mxu0 0
  %635 = vmatpush1.bf16.msra.mxu0 %v614
  %636 = vmatprep.subr.bf16.mxu0 0
  %637 = vmatpush1.bf16.msra.mxu0 %v615
  %638 = vmatprep.subr.bf16.mxu0 0
  %639 = vmatpush1.bf16.msra.mxu0 %v616
  %640 = vmatprep.subr.bf16.mxu0 0
  %641 = vmatpush1.bf16.msra.mxu0 %v617
  %642 = vmatprep.subr.bf16.mxu0 0
  %643 = vmatpush1.bf16.msra.mxu0 0
  %644 = vmatprep.subr.bf16.mxu0 0
  %645 = vmatpush1.bf16.msra.mxu0 0
  %646 = vmatprep.subr.bf16.mxu0 0
  %647 = vmatpush1.bf16.msra.mxu0 0
  %648 = vmatprep.subr.bf16.mxu0 0
  %649 = vmatpush1.bf16.msra.mxu0 0
  %650 = vmatprep.subr.bf16.mxu0 0
  %651 = vmatpush1.bf16.msra.mxu0 0
  %652 = vmatprep.subr.bf16.mxu0 0
  %653 = vmatpush1.bf16.msra.mxu0 0
  %654 = vmatprep.subr.bf16.mxu0 0
  %655 = vmatpush1.bf16.msra.mxu0 0
  %656 = vmatprep.subr.bf16.mxu0 0
  %657 = vmatpush1.bf16.msra.mxu0 0
  %658 = vmatprep.mubr.bf16.mxu0 0
  %659 = vmatmul.mubr.bf16.gmra.mrb[0].mxu0 %v561
  %v660 = vpop.f32.mrb[0].mxu0
  %v661 = vadd.f32 0.0, %v660
  %v662 = vpop.f32.mrb[0].mxu0
  %v663 = vpop.f32.mrb[0].mxu0
  %v664 = vadd.f32 0.0, %v663
  %v665 = vpop.f32.mrb[0].mxu0
  %666 = vdwg.mxu0
  %v667 = vld [vmem:[%s2 + $0x10] sm:$0xff]
  %v668 = vld [vmem:[%s2 + $0x18] sm:$0xff]
  %v669 = vsel %vm259, %v667, 0.0
  %670 = vadd.xlane.f32.xlu0 %v669
  %v671 = vpop.xlane.xlu0 %670
  %v672 = vsel %vm259, %v668, 0.0
  %673 = vadd.xlane.f32.xlu0 %v672
  %v674 = vpop.xlane.xlu0 %673
  %v675 = vsub.f32 1.0, %v671
  %v676 = vsub.f32 1.0, %v674
  %v677 = vmul.f32 %v661, %v675
  %v678 = vmul.f32 %v664, %v676
  %v680 = vsel %vm259, %v667, 0
  %v683 = vsel %vm259, %v668, 0
  %685 = vmatprep.subr.mxu0 0.0
  %686 = vmatpush1.msra.mxu0 %v554
  %687 = vmatprep.subr.mxu0 0.0
  %688 = vmatpush1.msra.mxu0 0.0
  %689 = vmatprep.subr.mxu0 0.0
  %690 = vmatpush1.msra.mxu0 0.0
  %691 = vmatprep.subr.mxu0 0.0
  %692 = vmatpush1.msra.mxu0 0.0
  %693 = vmatprep.subr.mxu0 0.0
  %694 = vmatpush1.msra.mxu0 0.0
  %695 = vmatprep.subr.mxu0 0.0
  %696 = vmatpush1.msra.mxu0 0.0
  %697 = vmatprep.subr.mxu0 0.0
  %698 = vmatpush1.msra.mxu0 0.0
  %699 = vmatprep.subr.mxu0 0.0
  %700 = vmatpush1.msra.mxu0 0.0
  %701 = vmatprep.subr.mxu0 0.0
  %702 = vmatpush1.msra.mxu0 0.0
  %703 = vmatprep.subr.mxu0 0.0
  %704 = vmatpush1.msra.mxu0 0.0
  %705 = vmatprep.subr.mxu0 0.0
  %706 = vmatpush1.msra.mxu0 0.0
  %707 = vmatprep.subr.mxu0 0.0
  %708 = vmatpush1.msra.mxu0 0.0
  %709 = vmatprep.subr.mxu0 0.0
  %710 = vmatpush1.msra.mxu0 0.0
  %711 = vmatprep.subr.mxu0 0.0
  %712 = vmatpush1.msra.mxu0 0.0
  %713 = vmatprep.subr.mxu0 0.0
  %714 = vmatpush1.msra.mxu0 0.0
  %715 = vmatprep.subr.mxu0 0.0
  %716 = vmatpush1.msra.mxu0 0.0
  %717 = vmatprep.subr.mxu0 0.0
  %718 = vmatpush1.msra.mxu0 0.0
  %719 = vmatprep.subr.mxu0 0.0
  %720 = vmatpush1.msra.mxu0 0.0
  %721 = vmatprep.subr.mxu0 0.0
  %722 = vmatpush1.msra.mxu0 0.0
  %723 = vmatprep.subr.mxu0 0.0
  %724 = vmatpush1.msra.mxu0 0.0
  %725 = vmatprep.subr.mxu0 0.0
  %726 = vmatpush1.msra.mxu0 0.0
  %727 = vmatprep.subr.mxu0 0.0
  %728 = vmatpush1.msra.mxu0 0.0
  %729 = vmatprep.subr.mxu0 0.0
  %730 = vmatpush1.msra.mxu0 0.0
  %731 = vmatprep.subr.mxu0 0.0
  %732 = vmatpush1.msra.mxu0 0.0
  %733 = vmatprep.subr.mxu0 0.0
  %734 = vmatpush1.msra.mxu0 0.0
  %735 = vmatprep.subr.mxu0 0.0
  %736 = vmatpush1.msra.mxu0 0.0
  %737 = vmatprep.subr.mxu0 0.0
  %738 = vmatpush1.msra.mxu0 0.0
  %739 = vmatprep.subr.mxu0 0.0
  %740 = vmatpush1.msra.mxu0 0.0
  %741 = vmatprep.subr.mxu0 0.0
  %742 = vmatpush1.msra.mxu0 0.0
  %743 = vmatprep.subr.mxu0 0.0
  %744 = vmatpush1.msra.mxu0 0.0
  %745 = vmatprep.subr.mxu0 0.0
  %746 = vmatpush1.msra.mxu0 0.0
  %747 = vmatprep.subr.mxu0 0.0
  %748 = vmatpush1.msra.mxu0 0.0
  %749 = vmatprep.mubr.f32.mxu0 0.0
  %750 = vmatmul.mubr.f32.gmra.mrb[0].mxu0 %v680
  %v751 = vpop.f32.mrb[0].mxu0
  %v752 = vadd.f32 0.0, %v751
  %v753 = vpop.f32.mrb[0].mxu0
  %754 = vmatprep.mubr.f32.mxu0 0.0
  %755 = vmatmul.mubr.f32.gmra.mrb[0].mxu0 %v683
  %v756 = vpop.f32.mrb[0].mxu0
  %v757 = vadd.f32 0.0, %v756
  %v758 = vpop.f32.mrb[0].mxu0
  %759 = vdwg.mxu0
  %v760 = vadd.f32 %v677, %v752
  %v761 = vadd.f32 %v678, %v757
  %v762 = vpack.c.bf16 %v761, %v760
  %v763 = vld [vmem:[%s0 + $0xd0] sm:$0xf]
  %v764 = vld [vmem:[%s0 + $0xd4] sm:$0xf]
  %v765 = vld [vmem:[%s0 + $0xd8] sm:$0xf]
  %v766 = vld [vmem:[%s0 + $0xdc] sm:$0xf]
  %v767 = vld [vmem:[%s0 + $0xe0] sm:$0xf]
  %v768 = vld [vmem:[%s0 + $0xe4] sm:$0xf]
  %v769 = vld [vmem:[%s0 + $0xe8] sm:$0xf]
  %v770 = vld [vmem:[%s0 + $0xec] sm:$0xf]
  %v771 = vld [vmem:[%s0 + $0xf0] sm:$0xf]
  %v772 = vld [vmem:[%s0 + $0xf4] sm:$0xf]
  %v773 = vld [vmem:[%s0 + $0xf8] sm:$0xf]
  %v774 = vld [vmem:[%s0 + $0xfc] sm:$0xf]
  %v775 = vld [vmem:[%s0 + $0x100] sm:$0xf]
  %v776 = vld [vmem:[%s0 + $0x104] sm:$0xf]
  %v777 = vld [vmem:[%s0 + $0x108] sm:$0xf]
  %v778 = vld [vmem:[%s0 + $0x10c] sm:$0xf]
  %v795 = vunpack.c.l.b16 %v763
  %v796 = vunpack.c.l.b16 %v764
  %v797 = vunpack.c.l.b16 %v765
  %v798 = vunpack.c.l.b16 %v766
  %v799 = vunpack.c.l.b16 %v767
  %v800 = vunpack.c.l.b16 %v768
  %v801 = vunpack.c.l.b16 %v769
  %v802 = vunpack.c.l.b16 %v770
  %v803 = vunpack.c.l.b16 %v771
  %v804 = vunpack.c.l.b16 %v772
  %v805 = vunpack.c.l.b16 %v773
  %v806 = vunpack.c.l.b16 %v774
  %v807 = vunpack.c.l.b16 %v775
  %v808 = vunpack.c.l.b16 %v776
  %v809 = vunpack.c.l.b16 %v777
  %v810 = vunpack.c.l.b16 %v778
  %v811 = vpack.c.b16 %v796, %v795
  %v812 = vpack.c.b16 %v798, %v797
  %v813 = vpack.c.b16 %v800, %v799
  %v814 = vpack.c.b16 %v802, %v801
  %v815 = vpack.c.b16 %v804, %v803
  %v816 = vpack.c.b16 %v806, %v805
  %v817 = vpack.c.b16 %v808, %v807
  %v818 = vpack.c.b16 %v810, %v809
  %827 = vmatprep.subr.bf16.mxu0 0
  %828 = vmatpush1.bf16.msra.mxu0 %v811
  %829 = vmatprep.subr.bf16.mxu0 0
  %830 = vmatpush1.bf16.msra.mxu0 %v812
  %831 = vmatprep.subr.bf16.mxu0 0
  %832 = vmatpush1.bf16.msra.mxu0 %v813
  %833 = vmatprep.subr.bf16.mxu0 0
  %834 = vmatpush1.bf16.msra.mxu0 %v814
  %835 = vmatprep.subr.bf16.mxu0 0
  %836 = vmatpush1.bf16.msra.mxu0 %v815
  %837 = vmatprep.subr.bf16.mxu0 0
  %838 = vmatpush1.bf16.msra.mxu0 %v816
  %839 = vmatprep.subr.bf16.mxu0 0
  %840 = vmatpush1.bf16.msra.mxu0 %v817
  %841 = vmatprep.subr.bf16.mxu0 0
  %842 = vmatpush1.bf16.msra.mxu0 %v818
  %843 = vmatprep.subr.bf16.mxu0 0
  %844 = vmatpush1.bf16.msra.mxu0 0
  %845 = vmatprep.subr.bf16.mxu0 0
  %846 = vmatpush1.bf16.msra.mxu0 0
  %847 = vmatprep.subr.bf16.mxu0 0
  %848 = vmatpush1.bf16.msra.mxu0 0
  %849 = vmatprep.subr.bf16.mxu0 0
  %850 = vmatpush1.bf16.msra.mxu0 0
  %851 = vmatprep.subr.bf16.mxu0 0
  %852 = vmatpush1.bf16.msra.mxu0 0
  %853 = vmatprep.subr.bf16.mxu0 0
  %854 = vmatpush1.bf16.msra.mxu0 0
  %855 = vmatprep.subr.bf16.mxu0 0
  %856 = vmatpush1.bf16.msra.mxu0 0
  %857 = vmatprep.subr.bf16.mxu0 0
  %858 = vmatpush1.bf16.msra.mxu0 0
  %859 = vmatprep.mubr.bf16.mxu0 0
  %860 = vmatmul.mubr.bf16.gmra.mrb[0].mxu0 %v762
  %v861 = vpop.f32.mrb[0].mxu0
  %v862 = vadd.f32 0.0, %v861
  %v863 = vpop.f32.mrb[0].mxu0
  %v864 = vpop.f32.mrb[0].mxu0
  %v865 = vadd.f32 0.0, %v864
  %v866 = vpop.f32.mrb[0].mxu0
  %867 = vdwg.mxu0
  %v868 = vld [vmem:[%s0 + $0x110] sm:$0xf]
  %v869 = vld [vmem:[%s0 + $0x114] sm:$0xf]
  %v870 = vld [vmem:[%s0 + $0x118] sm:$0xf]
  %v871 = vld [vmem:[%s0 + $0x11c] sm:$0xf]
  %v872 = vld [vmem:[%s0 + $0x120] sm:$0xf]
  %v873 = vld [vmem:[%s0 + $0x124] sm:$0xf]
  %v874 = vld [vmem:[%s0 + $0x128] sm:$0xf]
  %v875 = vld [vmem:[%s0 + $0x12c] sm:$0xf]
  %v876 = vld [vmem:[%s0 + $0x130] sm:$0xf]
  %v877 = vld [vmem:[%s0 + $0x134] sm:$0xf]
  %v878 = vld [vmem:[%s0 + $0x138] sm:$0xf]
  %v879 = vld [vmem:[%s0 + $0x13c] sm:$0xf]
  %v880 = vld [vmem:[%s0 + $0x140] sm:$0xf]
  %v881 = vld [vmem:[%s0 + $0x144] sm:$0xf]
  %v882 = vld [vmem:[%s0 + $0x148] sm:$0xf]
  %v883 = vld [vmem:[%s0 + $0x14c] sm:$0xf]
  %v900 = vunpack.c.l.b16 %v868
  %v901 = vunpack.c.l.b16 %v869
  %v902 = vunpack.c.l.b16 %v870
  %v903 = vunpack.c.l.b16 %v871
  %v904 = vunpack.c.l.b16 %v872
  %v905 = vunpack.c.l.b16 %v873
  %v906 = vunpack.c.l.b16 %v874
  %v907 = vunpack.c.l.b16 %v875
  %v908 = vunpack.c.l.b16 %v876
  %v909 = vunpack.c.l.b16 %v877
  %v910 = vunpack.c.l.b16 %v878
  %v911 = vunpack.c.l.b16 %v879
  %v912 = vunpack.c.l.b16 %v880
  %v913 = vunpack.c.l.b16 %v881
  %v914 = vunpack.c.l.b16 %v882
  %v915 = vunpack.c.l.b16 %v883
  %v916 = vpack.c.b16 %v901, %v900
  %v917 = vpack.c.b16 %v903, %v902
  %v918 = vpack.c.b16 %v905, %v904
  %v919 = vpack.c.b16 %v907, %v906
  %v920 = vpack.c.b16 %v909, %v908
  %v921 = vpack.c.b16 %v911, %v910
  %v922 = vpack.c.b16 %v913, %v912
  %v923 = vpack.c.b16 %v915, %v914
  %932 = vmatprep.subr.bf16.mxu0 0
  %933 = vmatpush1.bf16.msra.mxu0 %v916
  %934 = vmatprep.subr.bf16.mxu0 0
  %935 = vmatpush1.bf16.msra.mxu0 %v917
  %936 = vmatprep.subr.bf16.mxu0 0
  %937 = vmatpush1.bf16.msra.mxu0 %v918
  %938 = vmatprep.subr.bf16.mxu0 0
  %939 = vmatpush1.bf16.msra.mxu0 %v919
  %940 = vmatprep.subr.bf16.mxu0 0
  %941 = vmatpush1.bf16.msra.mxu0 %v920
  %942 = vmatprep.subr.bf16.mxu0 0
  %943 = vmatpush1.bf16.msra.mxu0 %v921
  %944 = vmatprep.subr.bf16.mxu0 0
  %945 = vmatpush1.bf16.msra.mxu0 %v922
  %946 = vmatprep.subr.bf16.mxu0 0
  %947 = vmatpush1.bf16.msra.mxu0 %v923
  %948 = vmatprep.subr.bf16.mxu0 0
  %949 = vmatpush1.bf16.msra.mxu0 0
  %950 = vmatprep.subr.bf16.mxu0 0
  %951 = vmatpush1.bf16.msra.mxu0 0
  %952 = vmatprep.subr.bf16.mxu0 0
  %953 = vmatpush1.bf16.msra.mxu0 0
  %954 = vmatprep.subr.bf16.mxu0 0
  %955 = vmatpush1.bf16.msra.mxu0 0
  %956 = vmatprep.subr.bf16.mxu0 0
  %957 = vmatpush1.bf16.msra.mxu0 0
  %958 = vmatprep.subr.bf16.mxu0 0
  %959 = vmatpush1.bf16.msra.mxu0 0
  %960 = vmatprep.subr.bf16.mxu0 0
  %961 = vmatpush1.bf16.msra.mxu0 0
  %962 = vmatprep.subr.bf16.mxu0 0
  %963 = vmatpush1.bf16.msra.mxu0 0
  %964 = vmatprep.mubr.bf16.mxu0 0
  %965 = vmatmul.mubr.bf16.gmra.mrb[0].mxu0 %v762
  %v966 = vpop.f32.mrb[0].mxu0
  %v967 = vadd.f32 0.0, %v966
  %v968 = vpop.f32.mrb[0].mxu0
  %v969 = vpop.f32.mrb[0].mxu0
  %v970 = vadd.f32 0.0, %v969
  %v971 = vpop.f32.mrb[0].mxu0
  %972 = vdwg.mxu0
  %v973 = vld [vmem:[%s0 + $0x150] sm:$0xf]
  %v974 = vld [vmem:[%s0 + $0x154] sm:$0xf]
  %v975 = vld [vmem:[%s0 + $0x158] sm:$0xf]
  %v976 = vld [vmem:[%s0 + $0x15c] sm:$0xf]
  %v977 = vld [vmem:[%s0 + $0x160] sm:$0xf]
  %v978 = vld [vmem:[%s0 + $0x164] sm:$0xf]
  %v979 = vld [vmem:[%s0 + $0x168] sm:$0xf]
  %v980 = vld [vmem:[%s0 + $0x16c] sm:$0xf]
  %v981 = vld [vmem:[%s0 + $0x170] sm:$0xf]
  %v982 = vld [vmem:[%s0 + $0x174] sm:$0xf]
  %v983 = vld [vmem:[%s0 + $0x178] sm:$0xf]
  %v984 = vld [vmem:[%s0 + $0x17c] sm:$0xf]
  %v985 = vld [vmem:[%s0 + $0x180] sm:$0xf]
  %v986 = vld [vmem:[%s0 + $0x184] sm:$0xf]
  %v987 = vld [vmem:[%s0 + $0x188] sm:$0xf]
  %v988 = vld [vmem:[%s0 + $0x18c] sm:$0xf]
  %v1005 = vunpack.c.l.b16 %v973
  %v1006 = vunpack.c.l.b16 %v974
  %v1007 = vunpack.c.l.b16 %v975
  %v1008 = vunpack.c.l.b16 %v976
  %v1009 = vunpack.c.l.b16 %v977
  %v1010 = vunpack.c.l.b16 %v978
  %v1011 = vunpack.c.l.b16 %v979
  %v1012 = vunpack.c.l.b16 %v980
  %v1013 = vunpack.c.l.b16 %v981
  %v1014 = vunpack.c.l.b16 %v982
  %v1015 = vunpack.c.l.b16 %v983
  %v1016 = vunpack.c.l.b16 %v984
  %v1017 = vunpack.c.l.b16 %v985
  %v1018 = vunpack.c.l.b16 %v986
  %v1019 = vunpack.c.l.b16 %v987
  %v1020 = vunpack.c.l.b16 %v988
  %v1021 = vpack.c.b16 %v1006, %v1005
  %v1022 = vpack.c.b16 %v1008, %v1007
  %v1023 = vpack.c.b16 %v1010, %v1009
  %v1024 = vpack.c.b16 %v1012, %v1011
  %v1025 = vpack.c.b16 %v1014, %v1013
  %v1026 = vpack.c.b16 %v1016, %v1015
  %v1027 = vpack.c.b16 %v1018, %v1017
  %v1028 = vpack.c.b16 %v1020, %v1019
  %1037 = vmatprep.subr.bf16.mxu0 0
  %1038 = vmatpush1.bf16.msra.mxu0 %v1021
  %1039 = vmatprep.subr.bf16.mxu0 0
  %1040 = vmatpush1.bf16.msra.mxu0 %v1022
  %1041 = vmatprep.subr.bf16.mxu0 0
  %1042 = vmatpush1.bf16.msra.mxu0 %v1023
  %1043 = vmatprep.subr.bf16.mxu0 0
  %1044 = vmatpush1.bf16.msra.mxu0 %v1024
  %1045 = vmatprep.subr.bf16.mxu0 0
  %1046 = vmatpush1.bf16.msra.mxu0 %v1025
  %1047 = vmatprep.subr.bf16.mxu0 0
  %1048 = vmatpush1.bf16.msra.mxu0 %v1026
  %1049 = vmatprep.subr.bf16.mxu0 0
  %1050 = vmatpush1.bf16.msra.mxu0 %v1027
  %1051 = vmatprep.subr.bf16.mxu0 0
  %1052 = vmatpush1.bf16.msra.mxu0 %v1028
  %1053 = vmatprep.subr.bf16.mxu0 0
  %1054 = vmatpush1.bf16.msra.mxu0 0
  %1055 = vmatprep.subr.bf16.mxu0 0
  %1056 = vmatpush1.bf16.msra.mxu0 0
  %1057 = vmatprep.subr.bf16.mxu0 0
  %1058 = vmatpush1.bf16.msra.mxu0 0
  %1059 = vmatprep.subr.bf16.mxu0 0
  %1060 = vmatpush1.bf16.msra.mxu0 0
  %1061 = vmatprep.subr.bf16.mxu0 0
  %1062 = vmatpush1.bf16.msra.mxu0 0
  %1063 = vmatprep.subr.bf16.mxu0 0
  %1064 = vmatpush1.bf16.msra.mxu0 0
  %1065 = vmatprep.subr.bf16.mxu0 0
  %1066 = vmatpush1.bf16.msra.mxu0 0
  %1067 = vmatprep.subr.bf16.mxu0 0
  %1068 = vmatpush1.bf16.msra.mxu0 0
  %1069 = vmatprep.mubr.bf16.mxu0 0
  %1070 = vmatmul.mubr.bf16.gmra.mrb[0].mxu0 %v762
  %v1071 = vpop.f32.mrb[0].mxu0
  %v1072 = vadd.f32 0.0, %v1071
  %v1073 = vpop.f32.mrb[0].mxu0
  %v1074 = vpop.f32.mrb[0].mxu0
  %v1075 = vadd.f32 0.0, %v1074
  %v1076 = vpop.f32.mrb[0].mxu0
  %1077 = vdwg.mxu0
  %1078 = vmatprep.subr.mxu0 0.0
  %1079 = vmatpush1.xpose.msra.mxu0 %v967
  %1080 = vmatprep.subr.mxu0 0.0
  %1081 = vmatpush1.xpose.msra.mxu0 %v970
  %1082 = vmatprep.subr.mxu0 0.0
  %1083 = vmatpush1.xpose.msra.mxu0 0.0
  %1084 = vmatprep.subr.mxu0 0.0
  %1085 = vmatpush1.xpose.msra.mxu0 0.0
  %1086 = vmatprep.subr.mxu0 0.0
  %1087 = vmatpush1.xpose.msra.mxu0 0.0
  %1088 = vmatprep.subr.mxu0 0.0
  %1089 = vmatpush1.xpose.msra.mxu0 0.0
  %1090 = vmatprep.subr.mxu0 0.0
  %1091 = vmatpush1.xpose.msra.mxu0 0.0
  %1092 = vmatprep.subr.mxu0 0.0
  %1093 = vmatpush1.xpose.msra.mxu0 0.0
  %1094 = vmatprep.subr.mxu0 0.0
  %1095 = vmatpush1.xpose.msra.mxu0 0.0
  %1096 = vmatprep.subr.mxu0 0.0
  %1097 = vmatpush1.xpose.msra.mxu0 0.0
  %1098 = vmatprep.subr.mxu0 0.0
  %1099 = vmatpush1.xpose.msra.mxu0 0.0
  %1100 = vmatprep.subr.mxu0 0.0
  %1101 = vmatpush1.xpose.msra.mxu0 0.0
  %1102 = vmatprep.subr.mxu0 0.0
  %1103 = vmatpush1.xpose.msra.mxu0 0.0
  %1104 = vmatprep.subr.mxu0 0.0
  %1105 = vmatpush1.xpose.msra.mxu0 0.0
  %1106 = vmatprep.subr.mxu0 0.0
  %1107 = vmatpush1.xpose.msra.mxu0 0.0
  %1108 = vmatprep.subr.mxu0 0.0
  %1109 = vmatpush1.xpose.msra.mxu0 0.0
  %1110 = vmatprep.subr.mxu0 0.0
  %1111 = vmatpush1.xpose.msra.mxu0 0.0
  %1112 = vmatprep.subr.mxu0 0.0
  %1113 = vmatpush1.xpose.msra.mxu0 0.0
  %1114 = vmatprep.subr.mxu0 0.0
  %1115 = vmatpush1.xpose.msra.mxu0 0.0
  %1116 = vmatprep.subr.mxu0 0.0
  %1117 = vmatpush1.xpose.msra.mxu0 0.0
  %1118 = vmatprep.subr.mxu0 0.0
  %1119 = vmatpush1.xpose.msra.mxu0 0.0
  %1120 = vmatprep.subr.mxu0 0.0
  %1121 = vmatpush1.xpose.msra.mxu0 0.0
  %1122 = vmatprep.subr.mxu0 0.0
  %1123 = vmatpush1.xpose.msra.mxu0 0.0
  %1124 = vmatprep.subr.mxu0 0.0
  %1125 = vmatpush1.xpose.msra.mxu0 0.0
  %1126 = vmatprep.subr.mxu0 0.0
  %1127 = vmatpush1.xpose.msra.mxu0 0.0
  %1128 = vmatprep.subr.mxu0 0.0
  %1129 = vmatpush1.xpose.msra.mxu0 0.0
  %1130 = vmatprep.subr.mxu0 0.0
  %1131 = vmatpush1.xpose.msra.mxu0 0.0
  %1132 = vmatprep.subr.mxu0 0.0
  %1133 = vmatpush1.xpose.msra.mxu0 0.0
  %1134 = vmatprep.subr.mxu0 0.0
  %1135 = vmatpush1.xpose.msra.mxu0 0.0
  %1136 = vmatprep.subr.mxu0 0.0
  %1137 = vmatpush1.xpose.msra.mxu0 0.0
  %1138 = vmatprep.subr.mxu0 0.0
  %1139 = vmatpush1.xpose.msra.mxu0 0.0
  %1140 = vmatprep.subr.mxu0 0.0
  %1141 = vmatpush1.xpose.msra.mxu0 0.0
  %1142 = vmatprep.mubr.f32.mxu0 0.0
  %1143 = vmatmul.mubr.f32.gmra.mrb[0].mxu0 %v862
  %v1144 = vpop.f32.mrb[0].mxu0
  %v1145 = vadd.f32 0.0, %v1144
  %v1146 = vpop.f32.mrb[0].mxu0
  %1147 = vmatprep.mubr.f32.mxu0 0.0
  %1148 = vmatmul.mubr.f32.gmra.mrb[0].mxu0 %v865
  %v1149 = vpop.f32.mrb[0].mxu0
  %v1150 = vadd.f32 0.0, %v1149
  %v1151 = vpop.f32.mrb[0].mxu0
  %1152 = vdwg.mxu0
  %v1153 = vmul.f32 %v1145, 0.17677669
  %v1154 = vmul.f32 %v1150, 0.17677669
  %v1155 = vld [vmem:[%s2 + $0x20] sm:$0xff]
  %v1156 = vld [vmem:[%s2 + $0x28] sm:$0xff]
  %v1157 = vadd.f32 %v1153, %v1155
  %v1158 = vadd.f32 %v1154, %v1156
  %vm1159 = vcmask 130048
  %v1160 = vsel %vm1159, %v1157, -inf
  %1161 = vmax.xlane.f32.xlu0 %v1160
  %v1162 = vpop.xlane.xlu0 %1161
  %v1163 = vsel %vm1159, %v1158, -inf
  %1164 = vmax.xlane.f32.xlu0 %v1163
  %v1165 = vpop.xlane.xlu0 %1164
  %v1166 = vsub.f32 %v1157, %v1162
  %v1167 = vsub.f32 %v1158, %v1165
  %v1168 = vmul.f32 %v1166, 1.442695
  %v1169 = vpow.pop %v1168
  %v1170 = vmul.f32 %v1167, 1.442695
  %v1171 = vpow.pop %v1170
  %v1172 = vsel %vm1159, %v1169, 0.0
  %1173 = vadd.xlane.f32.xlu0 %v1172
  %v1174 = vpop.xlane.xlu0 %1173
  %v1175 = vsel %vm1159, %v1171, 0.0
  %1176 = vadd.xlane.f32.xlu0 %v1175
  %v1177 = vpop.xlane.xlu0 %1176
  %v1178 = vrcp.pop %v1174
  %v1179 = vrcp.pop %v1177
  %v1180 = vmul.f32 %v1169, %v1178
  %v1181 = vmul.f32 %v1171, %v1179
  %v1183 = vsel %vm1159, %v1180, 0
  %v1186 = vsel %vm1159, %v1181, 0
  %1188 = vmatprep.subr.mxu0 0.0
  %1189 = vmatpush1.msra.mxu0 %v1072
  %1190 = vmatprep.subr.mxu0 0.0
  %1191 = vmatpush1.msra.mxu0 %v1075
  %1192 = vmatprep.subr.mxu0 0.0
  %1193 = vmatpush1.msra.mxu0 0.0
  %1194 = vmatprep.subr.mxu0 0.0
  %1195 = vmatpush1.msra.mxu0 0.0
  %1196 = vmatprep.subr.mxu0 0.0
  %1197 = vmatpush1.msra.mxu0 0.0
  %1198 = vmatprep.subr.mxu0 0.0
  %1199 = vmatpush1.msra.mxu0 0.0
  %1200 = vmatprep.subr.mxu0 0.0
  %1201 = vmatpush1.msra.mxu0 0.0
  %1202 = vmatprep.subr.mxu0 0.0
  %1203 = vmatpush1.msra.mxu0 0.0
  %1204 = vmatprep.subr.mxu0 0.0
  %1205 = vmatpush1.msra.mxu0 0.0
  %1206 = vmatprep.subr.mxu0 0.0
  %1207 = vmatpush1.msra.mxu0 0.0
  %1208 = vmatprep.subr.mxu0 0.0
  %1209 = vmatpush1.msra.mxu0 0.0
  %1210 = vmatprep.subr.mxu0 0.0
  %1211 = vmatpush1.msra.mxu0 0.0
  %1212 = vmatprep.subr.mxu0 0.0
  %1213 = vmatpush1.msra.mxu0 0.0
  %1214 = vmatprep.subr.mxu0 0.0
  %1215 = vmatpush1.msra.mxu0 0.0
  %1216 = vmatprep.subr.mxu0 0.0
  %1217 = vmatpush1.msra.mxu0 0.0
  %1218 = vmatprep.subr.mxu0 0.0
  %1219 = vmatpush1.msra.mxu0 0.0
  %1220 = vmatprep.subr.mxu0 0.0
  %1221 = vmatpush1.msra.mxu0 0.0
  %1222 = vmatprep.subr.mxu0 0.0
  %1223 = vmatpush1.msra.mxu0 0.0
  %1224 = vmatprep.subr.mxu0 0.0
  %1225 = vmatpush1.msra.mxu0 0.0
  %1226 = vmatprep.subr.mxu0 0.0
  %1227 = vmatpush1.msra.mxu0 0.0
  %1228 = vmatprep.subr.mxu0 0.0
  %1229 = vmatpush1.msra.mxu0 0.0
  %1230 = vmatprep.subr.mxu0 0.0
  %1231 = vmatpush1.msra.mxu0 0.0
  %1232 = vmatprep.subr.mxu0 0.0
  %1233 = vmatpush1.msra.mxu0 0.0
  %1234 = vmatprep.subr.mxu0 0.0
  %1235 = vmatpush1.msra.mxu0 0.0
  %1236 = vmatprep.subr.mxu0 0.0
  %1237 = vmatpush1.msra.mxu0 0.0
  %1238 = vmatprep.subr.mxu0 0.0
  %1239 = vmatpush1.msra.mxu0 0.0
  %1240 = vmatprep.subr.mxu0 0.0
  %1241 = vmatpush1.msra.mxu0 0.0
  %1242 = vmatprep.subr.mxu0 0.0
  %1243 = vmatpush1.msra.mxu0 0.0
  %1244 = vmatprep.subr.mxu0 0.0
  %1245 = vmatpush1.msra.mxu0 0.0
  %1246 = vmatprep.subr.mxu0 0.0
  %1247 = vmatpush1.msra.mxu0 0.0
  %1248 = vmatprep.subr.mxu0 0.0
  %1249 = vmatpush1.msra.mxu0 0.0
  %1250 = vmatprep.subr.mxu0 0.0
  %1251 = vmatpush1.msra.mxu0 0.0
  %1252 = vmatprep.mubr.f32.mxu0 0.0
  %1253 = vmatmul.mubr.f32.gmra.mrb[0].mxu0 %v1183
  %v1254 = vpop.f32.mrb[0].mxu0
  %v1255 = vadd.f32 0.0, %v1254
  %v1256 = vpop.f32.mrb[0].mxu0
  %1257 = vmatprep.mubr.f32.mxu0 0.0
  %1258 = vmatmul.mubr.f32.gmra.mrb[0].mxu0 %v1186
  %v1259 = vpop.f32.mrb[0].mxu0
  %v1260 = vadd.f32 0.0, %v1259
  %v1261 = vpop.f32.mrb[0].mxu0
  %1262 = vdwg.mxu0
  %v1263 = vpack.c.bf16 %v1260, %v1255
  %v1264 = vld [vmem:[%s0 + $0x190] sm:$0xf]
  %v1265 = vld [vmem:[%s0 + $0x194] sm:$0xf]
  %v1266 = vld [vmem:[%s0 + $0x198] sm:$0xf]
  %v1267 = vld [vmem:[%s0 + $0x19c] sm:$0xf]
  %v1268 = vld [vmem:[%s0 + $0x1a0] sm:$0xf]
  %v1269 = vld [vmem:[%s0 + $0x1a4] sm:$0xf]
  %v1270 = vld [vmem:[%s0 + $0x1a8] sm:$0xf]
  %v1271 = vld [vmem:[%s0 + $0x1ac] sm:$0xf]
  %v1272 = vld [vmem:[%s0 + $0x1b0] sm:$0xf]
  %v1273 = vld [vmem:[%s0 + $0x1b4] sm:$0xf]
  %v1274 = vld [vmem:[%s0 + $0x1b8] sm:$0xf]
  %v1275 = vld [vmem:[%s0 + $0x1bc] sm:$0xf]
  %v1276 = vld [vmem:[%s0 + $0x1c0] sm:$0xf]
  %v1277 = vld [vmem:[%s0 + $0x1c4] sm:$0xf]
  %v1278 = vld [vmem:[%s0 + $0x1c8] sm:$0xf]
  %v1279 = vld [vmem:[%s0 + $0x1cc] sm:$0xf]
  %v1296 = vunpack.c.l.b16 %v1264
  %v1297 = vunpack.c.l.b16 %v1265
  %v1298 = vunpack.c.l.b16 %v1266
  %v1299 = vunpack.c.l.b16 %v1267
  %v1300 = vunpack.c.l.b16 %v1268
  %v1301 = vunpack.c.l.b16 %v1269
  %v1302 = vunpack.c.l.b16 %v1270
  %v1303 = vunpack.c.l.b16 %v1271
  %v1304 = vunpack.c.l.b16 %v1272
  %v1305 = vunpack.c.l.b16 %v1273
  %v1306 = vunpack.c.l.b16 %v1274
  %v1307 = vunpack.c.l.b16 %v1275
  %v1308 = vunpack.c.l.b16 %v1276
  %v1309 = vunpack.c.l.b16 %v1277
  %v1310 = vunpack.c.l.b16 %v1278
  %v1311 = vunpack.c.l.b16 %v1279
  %v1312 = vpack.c.b16 %v1297, %v1296
  %v1313 = vpack.c.b16 %v1299, %v1298
  %v1314 = vpack.c.b16 %v1301, %v1300
  %v1315 = vpack.c.b16 %v1303, %v1302
  %v1316 = vpack.c.b16 %v1305, %v1304
  %v1317 = vpack.c.b16 %v1307, %v1306
  %v1318 = vpack.c.b16 %v1309, %v1308
  %v1319 = vpack.c.b16 %v1311, %v1310
  %1328 = vmatprep.subr.bf16.mxu0 0
  %1329 = vmatpush1.bf16.msra.mxu0 %v1312
  %1330 = vmatprep.subr.bf16.mxu0 0
  %1331 = vmatpush1.bf16.msra.mxu0 %v1313
  %1332 = vmatprep.subr.bf16.mxu0 0
  %1333 = vmatpush1.bf16.msra.mxu0 %v1314
  %1334 = vmatprep.subr.bf16.mxu0 0
  %1335 = vmatpush1.bf16.msra.mxu0 %v1315
  %1336 = vmatprep.subr.bf16.mxu0 0
  %1337 = vmatpush1.bf16.msra.mxu0 %v1316
  %1338 = vmatprep.subr.bf16.mxu0 0
  %1339 = vmatpush1.bf16.msra.mxu0 %v1317
  %1340 = vmatprep.subr.bf16.mxu0 0
  %1341 = vmatpush1.bf16.msra.mxu0 %v1318
  %1342 = vmatprep.subr.bf16.mxu0 0
  %1343 = vmatpush1.bf16.msra.mxu0 %v1319
  %1344 = vmatprep.subr.bf16.mxu0 0
  %1345 = vmatpush1.bf16.msra.mxu0 0
  %1346 = vmatprep.subr.bf16.mxu0 0
  %1347 = vmatpush1.bf16.msra.mxu0 0
  %1348 = vmatprep.subr.bf16.mxu0 0
  %1349 = vmatpush1.bf16.msra.mxu0 0
  %1350 = vmatprep.subr.bf16.mxu0 0
  %1351 = vmatpush1.bf16.msra.mxu0 0
  %1352 = vmatprep.subr.bf16.mxu0 0
  %1353 = vmatpush1.bf16.msra.mxu0 0
  %1354 = vmatprep.subr.bf16.mxu0 0
  %1355 = vmatpush1.bf16.msra.mxu0 0
  %1356 = vmatprep.subr.bf16.mxu0 0
  %1357 = vmatpush1.bf16.msra.mxu0 0
  %1358 = vmatprep.subr.bf16.mxu0 0
  %1359 = vmatpush1.bf16.msra.mxu0 0
  %1360 = vmatprep.mubr.bf16.mxu0 0
  %1361 = vmatmul.mubr.bf16.gmra.mrb[0].mxu0 %v1263
  %v1362 = vpop.f32.mrb[0].mxu0
  %v1363 = vadd.f32 0.0, %v1362
  %v1364 = vpop.f32.mrb[0].mxu0
  %v1365 = vpop.f32.mrb[0].mxu0
  %v1366 = vadd.f32 0.0, %v1365
  %v1367 = vpop.f32.mrb[0].mxu0
  %1368 = vdwg.mxu0
  %v1369 = vadd.f32 %v760, %v1363
  %v1370 = vadd.f32 %v761, %v1366
  %v1371 = vpack.c.bf16 %v1370, %v1369
  %v1372 = vld [vmem:[%s0 + $0x1d0] sm:$0xf]
  %v1373 = vld [vmem:[%s0 + $0x1d4] sm:$0xf]
  %v1374 = vld [vmem:[%s0 + $0x1d8] sm:$0xf]
  %v1375 = vld [vmem:[%s0 + $0x1dc] sm:$0xf]
  %v1376 = vld [vmem:[%s0 + $0x1e0] sm:$0xf]
  %v1377 = vld [vmem:[%s0 + $0x1e4] sm:$0xf]
  %v1378 = vld [vmem:[%s0 + $0x1e8] sm:$0xf]
  %v1379 = vld [vmem:[%s0 + $0x1ec] sm:$0xf]
  %v1380 = vld [vmem:[%s0 + $0x1f0] sm:$0xf]
  %v1381 = vld [vmem:[%s0 + $0x1f4] sm:$0xf]
  %v1382 = vld [vmem:[%s0 + $0x1f8] sm:$0xf]
  %v1383 = vld [vmem:[%s0 + $0x1fc] sm:$0xf]
  %v1384 = vld [vmem:[%s0 + $0x200] sm:$0xf]
  %v1385 = vld [vmem:[%s0 + $0x204] sm:$0xf]
  %v1386 = vld [vmem:[%s0 + $0x208] sm:$0xf]
  %v1387 = vld [vmem:[%s0 + $0x20c] sm:$0xf]
  %v1404 = vunpack.c.l.b16 %v1372
  %v1405 = vunpack.c.l.b16 %v1373
  %v1406 = vunpack.c.l.b16 %v1374
  %v1407 = vunpack.c.l.b16 %v1375
  %v1408 = vunpack.c.l.b16 %v1376
  %v1409 = vunpack.c.l.b16 %v1377
  %v1410 = vunpack.c.l.b16 %v1378
  %v1411 = vunpack.c.l.b16 %v1379
  %v1412 = vunpack.c.l.b16 %v1380
  %v1413 = vunpack.c.l.b16 %v1381
  %v1414 = vunpack.c.l.b16 %v1382
  %v1415 = vunpack.c.l.b16 %v1383
  %v1416 = vunpack.c.l.b16 %v1384
  %v1417 = vunpack.c.l.b16 %v1385
  %v1418 = vunpack.c.l.b16 %v1386
  %v1419 = vunpack.c.l.b16 %v1387
  %v1420 = vpack.c.b16 %v1405, %v1404
  %v1421 = vpack.c.b16 %v1407, %v1406
  %v1422 = vpack.c.b16 %v1409, %v1408
  %v1423 = vpack.c.b16 %v1411, %v1410
  %v1424 = vpack.c.b16 %v1413, %v1412
  %v1425 = vpack.c.b16 %v1415, %v1414
  %v1426 = vpack.c.b16 %v1417, %v1416
  %v1427 = vpack.c.b16 %v1419, %v1418
  %1436 = vmatprep.subr.bf16.mxu0 0
  %1437 = vmatpush1.bf16.msra.mxu0 %v1420
  %1438 = vmatprep.subr.bf16.mxu0 0
  %1439 = vmatpush1.bf16.msra.mxu0 %v1421
  %1440 = vmatprep.subr.bf16.mxu0 0
  %1441 = vmatpush1.bf16.msra.mxu0 %v1422
  %1442 = vmatprep.subr.bf16.mxu0 0
  %1443 = vmatpush1.bf16.msra.mxu0 %v1423
  %1444 = vmatprep.subr.bf16.mxu0 0
  %1445 = vmatpush1.bf16.msra.mxu0 %v1424
  %1446 = vmatprep.subr.bf16.mxu0 0
  %1447 = vmatpush1.bf16.msra.mxu0 %v1425
  %1448 = vmatprep.subr.bf16.mxu0 0
  %1449 = vmatpush1.bf16.msra.mxu0 %v1426
  %1450 = vmatprep.subr.bf16.mxu0 0
  %1451 = vmatpush1.bf16.msra.mxu0 %v1427
  %1452 = vmatprep.subr.bf16.mxu0 0
  %1453 = vmatpush1.bf16.msra.mxu0 0
  %1454 = vmatprep.subr.bf16.mxu0 0
  %1455 = vmatpush1.bf16.msra.mxu0 0
  %1456 = vmatprep.subr.bf16.mxu0 0
  %1457 = vmatpush1.bf16.msra.mxu0 0
  %1458 = vmatprep.subr.bf16.mxu0 0
  %1459 = vmatpush1.bf16.msra.mxu0 0
  %1460 = vmatprep.subr.bf16.mxu0 0
  %1461 = vmatpush1.bf16.msra.mxu0 0
  %1462 = vmatprep.subr.bf16.mxu0 0
  %1463 = vmatpush1.bf16.msra.mxu0 0
  %1464 = vmatprep.subr.bf16.mxu0 0
  %1465 = vmatpush1.bf16.msra.mxu0 0
  %1466 = vmatprep.subr.bf16.mxu0 0
  %1467 = vmatpush1.bf16.msra.mxu0 0
  %1468 = vmatprep.mubr.bf16.mxu0 0
  %1469 = vmatmul.mubr.bf16.gmra.mrb[0].mxu0 %v1371
  %v1470 = vpop.f32.mrb[0].mxu0
  %v1471 = vadd.f32 0.0, %v1470
  %v1472 = vpop.f32.mrb[0].mxu0
  %v1473 = vpop.f32.mrb[0].mxu0
  %v1474 = vadd.f32 0.0, %v1473
  %v1475 = vpop.f32.mrb[0].mxu0
  %1476 = vdwg.mxu0
  %1477 = vst [vmem:[%s3] sm:$0xff] %v1471
  %1478 = vst [vmem:[%s3 + $0x8] sm:$0xff] %v1474
  %1479 = vst [vmem:[%s3 + $0x10] sm:$0xff] %v554
  // Predicated region
  $region14: #{carllava_phase2_forward.1} parent=0 // pred_check
    _
  $region15: #{carllava_phase2_forward.1} parent=0 // pred_check_branch
    %1481 = sbr.rel (0) target = $region17
  $region16: #{carllava_phase2_forward.1} parent=0 // pred_region
    _
  $region17: #{carllava_phase2_forward.1} parent=0 // pred_fallthru
    _
  // Predicated region
  $region18: #{carllava_phase2_forward.1} parent=0 // pred_check
    _
  $region19: #{carllava_phase2_forward.1} parent=0 // pred_check_branch
    %1483 = sbr.rel (0) target = $region21
  $region20: #{carllava_phase2_forward.1} parent=0 // pred_region
    _
  $region21: #{carllava_phase2_forward.1} parent=0 // pred_fallthru
    _

</llo_original>
